<compile_context>
chip_gen: v7x
topology: tpu7x:2x2x1
jax: 0.10.0
libtpu: 0.0.40
codegen_flags: <defaults>
</compile_context>

<pallas_src>
import functools

import jax
import jax.numpy as jnp
from jax.experimental import pallas as pl
from jax.experimental.pallas import tpu as pltpu


def _round_up(n, m):
    return (n + m - 1) // m * m


def _lstm_kernel(x_ref, wx_ref, whh_ref, b_ref, wfc_ref, bfc_ref, out_ref,
                 *, B, T, Hp):
    """Single invocation: whole sequence resident in VMEM.

    PyTorch nn.LSTM gate order along the 4H axis: i, f, g, o (each gate padded
    to its own Hp-wide, 128-lane-aligned span).
    """
    G = 4 * Hp

    # ---- Hoisted input projection for all timesteps: one big MXU dot ----
    x = x_ref[...]                                        # (B*T, D)
    gx = (jnp.dot(x, wx_ref[...], preferred_element_type=jnp.float32)
          + b_ref[...])                                   # (B*T, G), bias fused once
    gx = gx.reshape(B, T, G)                              # lane dim unchanged -> cheap

    whh = whh_ref[...]                                    # (Hp, G)

    h = jnp.zeros((B, Hp), jnp.float32)
    c = jnp.zeros((B, Hp), jnp.float32)

    # ---- Fully-unrolled recurrence (T is small & static); h/c live in vregs ----
    for t in range(T):
        gates = gx[:, t, :] + jnp.dot(h, whh, preferred_element_type=jnp.float32)
        i_g = jax.nn.sigmoid(gates[:, 0 * Hp:1 * Hp])     # 128-lane-aligned slices
        f_g = jax.nn.sigmoid(gates[:, 1 * Hp:2 * Hp])
        g_g = jnp.tanh(gates[:, 2 * Hp:3 * Hp])
        o_g = jax.nn.sigmoid(gates[:, 3 * Hp:4 * Hp])
        c = f_g * c + i_g * g_g
        h = o_g * jnp.tanh(c)

    # ---- fc + softmax on the last hidden state (lane-dense, padded to Cp) ----
    logits = (jnp.dot(h, wfc_ref[...], preferred_element_type=jnp.float32)
              + bfc_ref[...])                             # (B, Cp); pad lanes ~ -1e30
    m = jnp.max(logits, axis=-1, keepdims=True)
    e = jnp.exp(logits - m)
    denom = jnp.sum(e, axis=-1, keepdims=True)
    out_ref[...] = e * pl.reciprocal(denom, approx=True)


def lstm_forward(x_btd, w_ih, w_hh, b_ih, b_hh, w_fc, b_fc):
    """Eval-mode forward of the PyTorch module.

    x_btd: (B, T, D) float32, batch_first.
    PyTorch-layout parameters: w_ih (4H, D), w_hh (4H, H), b_ih/b_hh (4H,),
    w_fc (C, H), b_fc (C,).
    """
    B, T, D = x_btd.shape
    H = w_hh.shape[1]
    C = w_fc.shape[0]
    Hp = _round_up(H, 128)          # per-gate lane span (128-lane aligned)
    Cp = _round_up(C, 128)          # lane-dense output
    G = 4 * Hp

    # ---- one-time parameter packing: transpose + gate-lane padding ----
    bias = (b_ih + b_hh).astype(jnp.float32)
    wx = jnp.zeros((D, G), jnp.float32)
    wh = jnp.zeros((Hp, G), jnp.float32)
    bb = jnp.zeros((1, G), jnp.float32)
    for k in range(4):
        wx = wx.at[:, k * Hp:k * Hp + H].set(w_ih[k * H:(k + 1) * H, :].T)
        wh = wh.at[:H, k * Hp:k * Hp + H].set(w_hh[k * H:(k + 1) * H, :].T)
        bb = bb.at[0, k * Hp:k * Hp + H].set(bias[k * H:(k + 1) * H])
    wfc = jnp.zeros((Hp, Cp), jnp.float32).at[:H, :C].set(w_fc.T)
    bfc = jnp.full((1, Cp), -1e30, jnp.float32).at[0, :C].set(b_fc)

    # Free reshape of the contiguous (B, T, D) buffer -- no transpose/HBM pass.
    x_flat = x_btd.reshape(B * T, D)

    kernel = functools.partial(_lstm_kernel, B=B, T=T, Hp=Hp)

    grid_spec = pltpu.PrefetchScalarGridSpec(
        num_scalar_prefetch=0,
        grid=(1,),                                   # single invocation
        in_specs=[
            pl.BlockSpec((B * T, D), lambda i: (0, 0)),   # x (all timesteps)
            pl.BlockSpec((D, G), lambda i: (0, 0)),       # W_ih^T (gate-padded)
            pl.BlockSpec((Hp, G), lambda i: (0, 0)),      # W_hh^T (gate-padded)
            pl.BlockSpec((1, G), lambda i: (0, 0)),       # b_ih + b_hh (padded)
            pl.BlockSpec((Hp, Cp), lambda i: (0, 0)),     # W_fc^T (padded)
            pl.BlockSpec((1, Cp), lambda i: (0, 0)),      # b_fc (pad lanes -1e30)
        ],
        out_specs=pl.BlockSpec((B, Cp), lambda i: (0, 0)),
    )

    out_padded = pl.pallas_call(
        kernel,
        out_shape=jax.ShapeDtypeStruct((B, Cp), jnp.float32),
        grid_spec=grid_spec,
        compiler_params=pltpu.CompilerParams(
            dimension_semantics=("arbitrary",)),
    )(x_flat, wx, wh, bb, wfc, bfc)

    return out_padded[:, :C]


def lstm_reference(x_btd, w_ih, w_hh, b_ih, b_hh, w_fc, b_fc):
    """Pure-JAX f32 reference of the same forward pass."""
    B, T, D = x_btd.shape
    H = w_hh.shape[1]
    w_ih_t = w_ih.T
    w_hh_t = w_hh.T
    bias = b_ih + b_hh
    h = jnp.zeros((B, H), jnp.float32)
    c = jnp.zeros((B, H), jnp.float32)
    for t in range(T):
        gates = x_btd[:, t, :] @ w_ih_t + h @ w_hh_t + bias
        i_g = jax.nn.sigmoid(gates[:, 0 * H:1 * H])
        f_g = jax.nn.sigmoid(gates[:, 1 * H:2 * H])
        g_g = jnp.tanh(gates[:, 2 * H:3 * H])
        o_g = jax.nn.sigmoid(gates[:, 3 * H:4 * H])
        c = f_g * c + i_g * g_g
        h = o_g * jnp.tanh(c)
    logits = h @ w_fc.T + b_fc
    return jax.nn.softmax(logits, axis=1)


if __name__ == "__main__":
    # Small shapes consistent with the module's forward.
    B, T, D, H, C = 2, 8, 16, 32, 4   # batch, seq, input_size, hidden, num_classes

    key = jax.random.PRNGKey(0)
    kx, k1, k2, k3, k4, k5, k6 = jax.random.split(key, 7)

    # PyTorch-style uniform init U(-1/sqrt(H), 1/sqrt(H)) for LSTM and Linear.
    s = 1.0 / jnp.sqrt(jnp.float32(H))
    w_ih = jax.random.uniform(k1, (4 * H, D), jnp.float32, -s, s)
    w_hh = jax.random.uniform(k2, (4 * H, H), jnp.float32, -s, s)
    b_ih = jax.random.uniform(k3, (4 * H,), jnp.float32, -s, s)
    b_hh = jax.random.uniform(k4, (4 * H,), jnp.float32, -s, s)
    w_fc = jax.random.uniform(k5, (C, H), jnp.float32, -s, s)
    b_fc = jax.random.uniform(k6, (C,), jnp.float32, -s, s)

    x = jax.random.normal(kx, (B, T, D), jnp.float32)    # (B, T, D) batch_first

    out = lstm_forward(x, w_ih, w_hh, b_ih, b_hh, w_fc, b_fc)
    out = jax.block_until_ready(out)

    ref = lstm_reference(x, w_ih, w_hh, b_ih, b_hh, w_fc, b_fc)
    assert out.shape == (B, C)
    # Tolerance accounts for the EUP approximate reciprocal in the softmax.
    assert jnp.allclose(out, ref, atol=2e-3, rtol=2e-3), "mismatch vs reference"

    print("KERNEL_OK")
</pallas_src>

<mosaic_0001>
module attributes {stable_mosaic.version = 11 : i64} {
  func.func @_lstm_kernel(%arg0: i32, %arg1: memref<16x16xf32, #tpu.memory_space<vmem>>, %arg2: memref<16x512xf32, #tpu.memory_space<vmem>>, %arg3: memref<128x512xf32, #tpu.memory_space<vmem>>, %arg4: memref<1x512xf32, #tpu.memory_space<vmem>>, %arg5: memref<128x128xf32, #tpu.memory_space<vmem>>, %arg6: memref<1x128xf32, #tpu.memory_space<vmem>>, %arg7: memref<2x128xf32, #tpu.memory_space<vmem>>) attributes {dimension_semantics = [#tpu.dimension_semantics<arbitrary>], iteration_bounds = array<i64: 1>, scalar_prefetch = 0 : i64, scratch_operands = 0 : i64, tpu.core_type = #tpu.core_type<tc>, window_params = [{pipeline_mode = #tpu.pipeline_mode<synchronous>, transform_indices = @transform_0, window_bounds = array<i64: 16, 16>}, {pipeline_mode = #tpu.pipeline_mode<synchronous>, transform_indices = @transform_1, window_bounds = array<i64: 16, 512>}, {pipeline_mode = #tpu.pipeline_mode<synchronous>, transform_indices = @transform_2, window_bounds = array<i64: 128, 512>}, {pipeline_mode = #tpu.pipeline_mode<synchronous>, transform_indices = @transform_3, window_bounds = array<i64: 1, 512>}, {pipeline_mode = #tpu.pipeline_mode<synchronous>, transform_indices = @transform_4, window_bounds = array<i64: 128, 128>}, {pipeline_mode = #tpu.pipeline_mode<synchronous>, transform_indices = @transform_5, window_bounds = array<i64: 1, 128>}, {pipeline_mode = #tpu.pipeline_mode<synchronous>, transform_indices = @transform_6, window_bounds = array<i64: 2, 128>}]} {
    %c0 = arith.constant 0 : index
    %c0_0 = arith.constant 0 : index
    %0 = vector.load %arg1[%c0, %c0_0] : memref<16x16xf32, #tpu.memory_space<vmem>>, vector<16x16xf32>
    %c0_1 = arith.constant 0 : index
    %c0_2 = arith.constant 0 : index
    %1 = vector.load %arg2[%c0_1, %c0_2] : memref<16x512xf32, #tpu.memory_space<vmem>>, vector<16x512xf32>
    %cst = arith.constant dense<0.000000e+00> : vector<16x512xf32>
    %2 = tpu.matmul %0, %1, %cst {dimension_numbers = #tpu.dot_dimension_numbers<[1], [0], [0], [1], [0, 0, 1, 1], [], []>} : vector<16x16xf32>, vector<16x512xf32>, vector<16x512xf32> -> vector<16x512xf32>
    %c0_3 = arith.constant 0 : index
    %c0_4 = arith.constant 0 : index
    %3 = vector.load %arg4[%c0_3, %c0_4] : memref<1x512xf32, #tpu.memory_space<vmem>>, vector<1x512xf32>
    %4 = vector.broadcast %3 : vector<1x512xf32> to vector<16x512xf32>
    %5 = arith.addf %2, %4 : vector<16x512xf32>
    %6 = vector.shape_cast %5 : vector<16x512xf32> to vector<2x8x512xf32>
    %c0_5 = arith.constant 0 : index
    %c0_6 = arith.constant 0 : index
    %7 = vector.load %arg3[%c0_5, %c0_6] : memref<128x512xf32, #tpu.memory_space<vmem>>, vector<128x512xf32>
    %cst_7 = arith.constant 0.000000e+00 : f32
    %8 = vector.broadcast %cst_7 : f32 to vector<2x128xf32>
    %cst_8 = arith.constant 0.000000e+00 : f32
    %9 = vector.broadcast %cst_8 : f32 to vector<2x128xf32>
    %10 = vector.extract_strided_slice %6 {offsets = [0, 0, 0], sizes = [2, 1, 512], strides = [1, 1, 1]} : vector<2x8x512xf32> to vector<2x1x512xf32>
    %11 = vector.shape_cast %10 : vector<2x1x512xf32> to vector<2x512xf32>
    %cst_9 = arith.constant dense<0.000000e+00> : vector<2x512xf32>
    %12 = tpu.matmul %8, %7, %cst_9 {dimension_numbers = #tpu.dot_dimension_numbers<[1], [0], [0], [1], [0, 0, 1, 1], [], []>} : vector<2x128xf32>, vector<128x512xf32>, vector<2x512xf32> -> vector<2x512xf32>
    %13 = arith.addf %11, %12 : vector<2x512xf32>
    %14 = vector.extract_strided_slice %13 {offsets = [0, 0], sizes = [2, 128], strides = [1, 1]} : vector<2x512xf32> to vector<2x128xf32>
    %15 = arith.negf %14 : vector<2x128xf32>
    %16 = math.exp %15 : vector<2x128xf32>
    %cst_10 = arith.constant 1.000000e+00 : f32
    %17 = vector.broadcast %cst_10 : f32 to vector<2x128xf32>
    %18 = arith.addf %17, %16 : vector<2x128xf32>
    %19 = arith.divf %17, %18 : vector<2x128xf32>
    %20 = vector.extract_strided_slice %13 {offsets = [0, 128], sizes = [2, 128], strides = [1, 1]} : vector<2x512xf32> to vector<2x128xf32>
    %21 = arith.negf %20 : vector<2x128xf32>
    %22 = math.exp %21 : vector<2x128xf32>
    %cst_11 = arith.constant 1.000000e+00 : f32
    %23 = vector.broadcast %cst_11 : f32 to vector<2x128xf32>
    %24 = arith.addf %23, %22 : vector<2x128xf32>
    %25 = arith.divf %23, %24 : vector<2x128xf32>
    %26 = vector.extract_strided_slice %13 {offsets = [0, 256], sizes = [2, 128], strides = [1, 1]} : vector<2x512xf32> to vector<2x128xf32>
    %27 = math.tanh %26 : vector<2x128xf32>
    %28 = vector.extract_strided_slice %13 {offsets = [0, 384], sizes = [2, 128], strides = [1, 1]} : vector<2x512xf32> to vector<2x128xf32>
    %29 = arith.negf %28 : vector<2x128xf32>
    %30 = math.exp %29 : vector<2x128xf32>
    %cst_12 = arith.constant 1.000000e+00 : f32
    %31 = vector.broadcast %cst_12 : f32 to vector<2x128xf32>
    %32 = arith.addf %31, %30 : vector<2x128xf32>
    %33 = arith.divf %31, %32 : vector<2x128xf32>
    %34 = arith.mulf %25, %9 : vector<2x128xf32>
    %35 = arith.mulf %19, %27 : vector<2x128xf32>
    %36 = arith.addf %34, %35 : vector<2x128xf32>
    %37 = math.tanh %36 : vector<2x128xf32>
    %38 = arith.mulf %33, %37 : vector<2x128xf32>
    %39 = vector.extract_strided_slice %6 {offsets = [0, 1, 0], sizes = [2, 1, 512], strides = [1, 1, 1]} : vector<2x8x512xf32> to vector<2x1x512xf32>
    %40 = vector.shape_cast %39 : vector<2x1x512xf32> to vector<2x512xf32>
    %cst_13 = arith.constant dense<0.000000e+00> : vector<2x512xf32>
    %41 = tpu.matmul %38, %7, %cst_13 {dimension_numbers = #tpu.dot_dimension_numbers<[1], [0], [0], [1], [0, 0, 1, 1], [], []>} : vector<2x128xf32>, vector<128x512xf32>, vector<2x512xf32> -> vector<2x512xf32>
    %42 = arith.addf %40, %41 : vector<2x512xf32>
    %43 = vector.extract_strided_slice %42 {offsets = [0, 0], sizes = [2, 128], strides = [1, 1]} : vector<2x512xf32> to vector<2x128xf32>
    %44 = arith.negf %43 : vector<2x128xf32>
    %45 = math.exp %44 : vector<2x128xf32>
    %cst_14 = arith.constant 1.000000e+00 : f32
    %46 = vector.broadcast %cst_14 : f32 to vector<2x128xf32>
    %47 = arith.addf %46, %45 : vector<2x128xf32>
    %48 = arith.divf %46, %47 : vector<2x128xf32>
    %49 = vector.extract_strided_slice %42 {offsets = [0, 128], sizes = [2, 128], strides = [1, 1]} : vector<2x512xf32> to vector<2x128xf32>
    %50 = arith.negf %49 : vector<2x128xf32>
    %51 = math.exp %50 : vector<2x128xf32>
    %cst_15 = arith.constant 1.000000e+00 : f32
    %52 = vector.broadcast %cst_15 : f32 to vector<2x128xf32>
    %53 = arith.addf %52, %51 : vector<2x128xf32>
    %54 = arith.divf %52, %53 : vector<2x128xf32>
    %55 = vector.extract_strided_slice %42 {offsets = [0, 256], sizes = [2, 128], strides = [1, 1]} : vector<2x512xf32> to vector<2x128xf32>
    %56 = math.tanh %55 : vector<2x128xf32>
    %57 = vector.extract_strided_slice %42 {offsets = [0, 384], sizes = [2, 128], strides = [1, 1]} : vector<2x512xf32> to vector<2x128xf32>
    %58 = arith.negf %57 : vector<2x128xf32>
    %59 = math.exp %58 : vector<2x128xf32>
    %cst_16 = arith.constant 1.000000e+00 : f32
    %60 = vector.broadcast %cst_16 : f32 to vector<2x128xf32>
    %61 = arith.addf %60, %59 : vector<2x128xf32>
    %62 = arith.divf %60, %61 : vector<2x128xf32>
    %63 = arith.mulf %54, %36 : vector<2x128xf32>
    %64 = arith.mulf %48, %56 : vector<2x128xf32>
    %65 = arith.addf %63, %64 : vector<2x128xf32>
    %66 = math.tanh %65 : vector<2x128xf32>
    %67 = arith.mulf %62, %66 : vector<2x128xf32>
    %68 = vector.extract_strided_slice %6 {offsets = [0, 2, 0], sizes = [2, 1, 512], strides = [1, 1, 1]} : vector<2x8x512xf32> to vector<2x1x512xf32>
    %69 = vector.shape_cast %68 : vector<2x1x512xf32> to vector<2x512xf32>
    %cst_17 = arith.constant dense<0.000000e+00> : vector<2x512xf32>
    %70 = tpu.matmul %67, %7, %cst_17 {dimension_numbers = #tpu.dot_dimension_numbers<[1], [0], [0], [1], [0, 0, 1, 1], [], []>} : vector<2x128xf32>, vector<128x512xf32>, vector<2x512xf32> -> vector<2x512xf32>
    %71 = arith.addf %69, %70 : vector<2x512xf32>
    %72 = vector.extract_strided_slice %71 {offsets = [0, 0], sizes = [2, 128], strides = [1, 1]} : vector<2x512xf32> to vector<2x128xf32>
    %73 = arith.negf %72 : vector<2x128xf32>
    %74 = math.exp %73 : vector<2x128xf32>
    %cst_18 = arith.constant 1.000000e+00 : f32
    %75 = vector.broadcast %cst_18 : f32 to vector<2x128xf32>
    %76 = arith.addf %75, %74 : vector<2x128xf32>
    %77 = arith.divf %75, %76 : vector<2x128xf32>
    %78 = vector.extract_strided_slice %71 {offsets = [0, 128], sizes = [2, 128], strides = [1, 1]} : vector<2x512xf32> to vector<2x128xf32>
    %79 = arith.negf %78 : vector<2x128xf32>
    %80 = math.exp %79 : vector<2x128xf32>
    %cst_19 = arith.constant 1.000000e+00 : f32
    %81 = vector.broadcast %cst_19 : f32 to vector<2x128xf32>
    %82 = arith.addf %81, %80 : vector<2x128xf32>
    %83 = arith.divf %81, %82 : vector<2x128xf32>
    %84 = vector.extract_strided_slice %71 {offsets = [0, 256], sizes = [2, 128], strides = [1, 1]} : vector<2x512xf32> to vector<2x128xf32>
    %85 = math.tanh %84 : vector<2x128xf32>
    %86 = vector.extract_strided_slice %71 {offsets = [0, 384], sizes = [2, 128], strides = [1, 1]} : vector<2x512xf32> to vector<2x128xf32>
    %87 = arith.negf %86 : vector<2x128xf32>
    %88 = math.exp %87 : vector<2x128xf32>
    %cst_20 = arith.constant 1.000000e+00 : f32
    %89 = vector.broadcast %cst_20 : f32 to vector<2x128xf32>
    %90 = arith.addf %89, %88 : vector<2x128xf32>
    %91 = arith.divf %89, %90 : vector<2x128xf32>
    %92 = arith.mulf %83, %65 : vector<2x128xf32>
    %93 = arith.mulf %77, %85 : vector<2x128xf32>
    %94 = arith.addf %92, %93 : vector<2x128xf32>
    %95 = math.tanh %94 : vector<2x128xf32>
    %96 = arith.mulf %91, %95 : vector<2x128xf32>
    %97 = vector.extract_strided_slice %6 {offsets = [0, 3, 0], sizes = [2, 1, 512], strides = [1, 1, 1]} : vector<2x8x512xf32> to vector<2x1x512xf32>
    %98 = vector.shape_cast %97 : vector<2x1x512xf32> to vector<2x512xf32>
    %cst_21 = arith.constant dense<0.000000e+00> : vector<2x512xf32>
    %99 = tpu.matmul %96, %7, %cst_21 {dimension_numbers = #tpu.dot_dimension_numbers<[1], [0], [0], [1], [0, 0, 1, 1], [], []>} : vector<2x128xf32>, vector<128x512xf32>, vector<2x512xf32> -> vector<2x512xf32>
    %100 = arith.addf %98, %99 : vector<2x512xf32>
    %101 = vector.extract_strided_slice %100 {offsets = [0, 0], sizes = [2, 128], strides = [1, 1]} : vector<2x512xf32> to vector<2x128xf32>
    %102 = arith.negf %101 : vector<2x128xf32>
    %103 = math.exp %102 : vector<2x128xf32>
    %cst_22 = arith.constant 1.000000e+00 : f32
    %104 = vector.broadcast %cst_22 : f32 to vector<2x128xf32>
    %105 = arith.addf %104, %103 : vector<2x128xf32>
    %106 = arith.divf %104, %105 : vector<2x128xf32>
    %107 = vector.extract_strided_slice %100 {offsets = [0, 128], sizes = [2, 128], strides = [1, 1]} : vector<2x512xf32> to vector<2x128xf32>
    %108 = arith.negf %107 : vector<2x128xf32>
    %109 = math.exp %108 : vector<2x128xf32>
    %cst_23 = arith.constant 1.000000e+00 : f32
    %110 = vector.broadcast %cst_23 : f32 to vector<2x128xf32>
    %111 = arith.addf %110, %109 : vector<2x128xf32>
    %112 = arith.divf %110, %111 : vector<2x128xf32>
    %113 = vector.extract_strided_slice %100 {offsets = [0, 256], sizes = [2, 128], strides = [1, 1]} : vector<2x512xf32> to vector<2x128xf32>
    %114 = math.tanh %113 : vector<2x128xf32>
    %115 = vector.extract_strided_slice %100 {offsets = [0, 384], sizes = [2, 128], strides = [1, 1]} : vector<2x512xf32> to vector<2x128xf32>
    %116 = arith.negf %115 : vector<2x128xf32>
    %117 = math.exp %116 : vector<2x128xf32>
    %cst_24 = arith.constant 1.000000e+00 : f32
    %118 = vector.broadcast %cst_24 : f32 to vector<2x128xf32>
    %119 = arith.addf %118, %117 : vector<2x128xf32>
    %120 = arith.divf %118, %119 : vector<2x128xf32>
    %121 = arith.mulf %112, %94 : vector<2x128xf32>
    %122 = arith.mulf %106, %114 : vector<2x128xf32>
    %123 = arith.addf %121, %122 : vector<2x128xf32>
    %124 = math.tanh %123 : vector<2x128xf32>
    %125 = arith.mulf %120, %124 : vector<2x128xf32>
    %126 = vector.extract_strided_slice %6 {offsets = [0, 4, 0], sizes = [2, 1, 512], strides = [1, 1, 1]} : vector<2x8x512xf32> to vector<2x1x512xf32>
    %127 = vector.shape_cast %126 : vector<2x1x512xf32> to vector<2x512xf32>
    %cst_25 = arith.constant dense<0.000000e+00> : vector<2x512xf32>
    %128 = tpu.matmul %125, %7, %cst_25 {dimension_numbers = #tpu.dot_dimension_numbers<[1], [0], [0], [1], [0, 0, 1, 1], [], []>} : vector<2x128xf32>, vector<128x512xf32>, vector<2x512xf32> -> vector<2x512xf32>
    %129 = arith.addf %127, %128 : vector<2x512xf32>
    %130 = vector.extract_strided_slice %129 {offsets = [0, 0], sizes = [2, 128], strides = [1, 1]} : vector<2x512xf32> to vector<2x128xf32>
    %131 = arith.negf %130 : vector<2x128xf32>
    %132 = math.exp %131 : vector<2x128xf32>
    %cst_26 = arith.constant 1.000000e+00 : f32
    %133 = vector.broadcast %cst_26 : f32 to vector<2x128xf32>
    %134 = arith.addf %133, %132 : vector<2x128xf32>
    %135 = arith.divf %133, %134 : vector<2x128xf32>
    %136 = vector.extract_strided_slice %129 {offsets = [0, 128], sizes = [2, 128], strides = [1, 1]} : vector<2x512xf32> to vector<2x128xf32>
    %137 = arith.negf %136 : vector<2x128xf32>
    %138 = math.exp %137 : vector<2x128xf32>
    %cst_27 = arith.constant 1.000000e+00 : f32
    %139 = vector.broadcast %cst_27 : f32 to vector<2x128xf32>
    %140 = arith.addf %139, %138 : vector<2x128xf32>
    %141 = arith.divf %139, %140 : vector<2x128xf32>
    %142 = vector.extract_strided_slice %129 {offsets = [0, 256], sizes = [2, 128], strides = [1, 1]} : vector<2x512xf32> to vector<2x128xf32>
    %143 = math.tanh %142 : vector<2x128xf32>
    %144 = vector.extract_strided_slice %129 {offsets = [0, 384], sizes = [2, 128], strides = [1, 1]} : vector<2x512xf32> to vector<2x128xf32>
    %145 = arith.negf %144 : vector<2x128xf32>
    %146 = math.exp %145 : vector<2x128xf32>
    %cst_28 = arith.constant 1.000000e+00 : f32
    %147 = vector.broadcast %cst_28 : f32 to vector<2x128xf32>
    %148 = arith.addf %147, %146 : vector<2x128xf32>
    %149 = arith.divf %147, %148 : vector<2x128xf32>
    %150 = arith.mulf %141, %123 : vector<2x128xf32>
    %151 = arith.mulf %135, %143 : vector<2x128xf32>
    %152 = arith.addf %150, %151 : vector<2x128xf32>
    %153 = math.tanh %152 : vector<2x128xf32>
    %154 = arith.mulf %149, %153 : vector<2x128xf32>
    %155 = vector.extract_strided_slice %6 {offsets = [0, 5, 0], sizes = [2, 1, 512], strides = [1, 1, 1]} : vector<2x8x512xf32> to vector<2x1x512xf32>
    %156 = vector.shape_cast %155 : vector<2x1x512xf32> to vector<2x512xf32>
    %cst_29 = arith.constant dense<0.000000e+00> : vector<2x512xf32>
    %157 = tpu.matmul %154, %7, %cst_29 {dimension_numbers = #tpu.dot_dimension_numbers<[1], [0], [0], [1], [0, 0, 1, 1], [], []>} : vector<2x128xf32>, vector<128x512xf32>, vector<2x512xf32> -> vector<2x512xf32>
    %158 = arith.addf %156, %157 : vector<2x512xf32>
    %159 = vector.extract_strided_slice %158 {offsets = [0, 0], sizes = [2, 128], strides = [1, 1]} : vector<2x512xf32> to vector<2x128xf32>
    %160 = arith.negf %159 : vector<2x128xf32>
    %161 = math.exp %160 : vector<2x128xf32>
    %cst_30 = arith.constant 1.000000e+00 : f32
    %162 = vector.broadcast %cst_30 : f32 to vector<2x128xf32>
    %163 = arith.addf %162, %161 : vector<2x128xf32>
    %164 = arith.divf %162, %163 : vector<2x128xf32>
    %165 = vector.extract_strided_slice %158 {offsets = [0, 128], sizes = [2, 128], strides = [1, 1]} : vector<2x512xf32> to vector<2x128xf32>
    %166 = arith.negf %165 : vector<2x128xf32>
    %167 = math.exp %166 : vector<2x128xf32>
    %cst_31 = arith.constant 1.000000e+00 : f32
    %168 = vector.broadcast %cst_31 : f32 to vector<2x128xf32>
    %169 = arith.addf %168, %167 : vector<2x128xf32>
    %170 = arith.divf %168, %169 : vector<2x128xf32>
    %171 = vector.extract_strided_slice %158 {offsets = [0, 256], sizes = [2, 128], strides = [1, 1]} : vector<2x512xf32> to vector<2x128xf32>
    %172 = math.tanh %171 : vector<2x128xf32>
    %173 = vector.extract_strided_slice %158 {offsets = [0, 384], sizes = [2, 128], strides = [1, 1]} : vector<2x512xf32> to vector<2x128xf32>
    %174 = arith.negf %173 : vector<2x128xf32>
    %175 = math.exp %174 : vector<2x128xf32>
    %cst_32 = arith.constant 1.000000e+00 : f32
    %176 = vector.broadcast %cst_32 : f32 to vector<2x128xf32>
    %177 = arith.addf %176, %175 : vector<2x128xf32>
    %178 = arith.divf %176, %177 : vector<2x128xf32>
    %179 = arith.mulf %170, %152 : vector<2x128xf32>
    %180 = arith.mulf %164, %172 : vector<2x128xf32>
    %181 = arith.addf %179, %180 : vector<2x128xf32>
    %182 = math.tanh %181 : vector<2x128xf32>
    %183 = arith.mulf %178, %182 : vector<2x128xf32>
    %184 = vector.extract_strided_slice %6 {offsets = [0, 6, 0], sizes = [2, 1, 512], strides = [1, 1, 1]} : vector<2x8x512xf32> to vector<2x1x512xf32>
    %185 = vector.shape_cast %184 : vector<2x1x512xf32> to vector<2x512xf32>
    %cst_33 = arith.constant dense<0.000000e+00> : vector<2x512xf32>
    %186 = tpu.matmul %183, %7, %cst_33 {dimension_numbers = #tpu.dot_dimension_numbers<[1], [0], [0], [1], [0, 0, 1, 1], [], []>} : vector<2x128xf32>, vector<128x512xf32>, vector<2x512xf32> -> vector<2x512xf32>
    %187 = arith.addf %185, %186 : vector<2x512xf32>
    %188 = vector.extract_strided_slice %187 {offsets = [0, 0], sizes = [2, 128], strides = [1, 1]} : vector<2x512xf32> to vector<2x128xf32>
    %189 = arith.negf %188 : vector<2x128xf32>
    %190 = math.exp %189 : vector<2x128xf32>
    %cst_34 = arith.constant 1.000000e+00 : f32
    %191 = vector.broadcast %cst_34 : f32 to vector<2x128xf32>
    %192 = arith.addf %191, %190 : vector<2x128xf32>
    %193 = arith.divf %191, %192 : vector<2x128xf32>
    %194 = vector.extract_strided_slice %187 {offsets = [0, 128], sizes = [2, 128], strides = [1, 1]} : vector<2x512xf32> to vector<2x128xf32>
    %195 = arith.negf %194 : vector<2x128xf32>
    %196 = math.exp %195 : vector<2x128xf32>
    %cst_35 = arith.constant 1.000000e+00 : f32
    %197 = vector.broadcast %cst_35 : f32 to vector<2x128xf32>
    %198 = arith.addf %197, %196 : vector<2x128xf32>
    %199 = arith.divf %197, %198 : vector<2x128xf32>
    %200 = vector.extract_strided_slice %187 {offsets = [0, 256], sizes = [2, 128], strides = [1, 1]} : vector<2x512xf32> to vector<2x128xf32>
    %201 = math.tanh %200 : vector<2x128xf32>
    %202 = vector.extract_strided_slice %187 {offsets = [0, 384], sizes = [2, 128], strides = [1, 1]} : vector<2x512xf32> to vector<2x128xf32>
    %203 = arith.negf %202 : vector<2x128xf32>
    %204 = math.exp %203 : vector<2x128xf32>
    %cst_36 = arith.constant 1.000000e+00 : f32
    %205 = vector.broadcast %cst_36 : f32 to vector<2x128xf32>
    %206 = arith.addf %205, %204 : vector<2x128xf32>
    %207 = arith.divf %205, %206 : vector<2x128xf32>
    %208 = arith.mulf %199, %181 : vector<2x128xf32>
    %209 = arith.mulf %193, %201 : vector<2x128xf32>
    %210 = arith.addf %208, %209 : vector<2x128xf32>
    %211 = math.tanh %210 : vector<2x128xf32>
    %212 = arith.mulf %207, %211 : vector<2x128xf32>
    %213 = vector.extract_strided_slice %6 {offsets = [0, 7, 0], sizes = [2, 1, 512], strides = [1, 1, 1]} : vector<2x8x512xf32> to vector<2x1x512xf32>
    %214 = vector.shape_cast %213 : vector<2x1x512xf32> to vector<2x512xf32>
    %cst_37 = arith.constant dense<0.000000e+00> : vector<2x512xf32>
    %215 = tpu.matmul %212, %7, %cst_37 {dimension_numbers = #tpu.dot_dimension_numbers<[1], [0], [0], [1], [0, 0, 1, 1], [], []>} : vector<2x128xf32>, vector<128x512xf32>, vector<2x512xf32> -> vector<2x512xf32>
    %216 = arith.addf %214, %215 : vector<2x512xf32>
    %217 = vector.extract_strided_slice %216 {offsets = [0, 0], sizes = [2, 128], strides = [1, 1]} : vector<2x512xf32> to vector<2x128xf32>
    %218 = arith.negf %217 : vector<2x128xf32>
    %219 = math.exp %218 : vector<2x128xf32>
    %cst_38 = arith.constant 1.000000e+00 : f32
    %220 = vector.broadcast %cst_38 : f32 to vector<2x128xf32>
    %221 = arith.addf %220, %219 : vector<2x128xf32>
    %222 = arith.divf %220, %221 : vector<2x128xf32>
    %223 = vector.extract_strided_slice %216 {offsets = [0, 128], sizes = [2, 128], strides = [1, 1]} : vector<2x512xf32> to vector<2x128xf32>
    %224 = arith.negf %223 : vector<2x128xf32>
    %225 = math.exp %224 : vector<2x128xf32>
    %cst_39 = arith.constant 1.000000e+00 : f32
    %226 = vector.broadcast %cst_39 : f32 to vector<2x128xf32>
    %227 = arith.addf %226, %225 : vector<2x128xf32>
    %228 = arith.divf %226, %227 : vector<2x128xf32>
    %229 = vector.extract_strided_slice %216 {offsets = [0, 256], sizes = [2, 128], strides = [1, 1]} : vector<2x512xf32> to vector<2x128xf32>
    %230 = math.tanh %229 : vector<2x128xf32>
    %231 = vector.extract_strided_slice %216 {offsets = [0, 384], sizes = [2, 128], strides = [1, 1]} : vector<2x512xf32> to vector<2x128xf32>
    %232 = arith.negf %231 : vector<2x128xf32>
    %233 = math.exp %232 : vector<2x128xf32>
    %cst_40 = arith.constant 1.000000e+00 : f32
    %234 = vector.broadcast %cst_40 : f32 to vector<2x128xf32>
    %235 = arith.addf %234, %233 : vector<2x128xf32>
    %236 = arith.divf %234, %235 : vector<2x128xf32>
    %237 = arith.mulf %228, %210 : vector<2x128xf32>
    %238 = arith.mulf %222, %230 : vector<2x128xf32>
    %239 = arith.addf %237, %238 : vector<2x128xf32>
    %240 = math.tanh %239 : vector<2x128xf32>
    %241 = arith.mulf %236, %240 : vector<2x128xf32>
    %c0_41 = arith.constant 0 : index
    %c0_42 = arith.constant 0 : index
    %242 = vector.load %arg5[%c0_41, %c0_42] : memref<128x128xf32, #tpu.memory_space<vmem>>, vector<128x128xf32>
    %cst_43 = arith.constant dense<0.000000e+00> : vector<2x128xf32>
    %243 = tpu.matmul %241, %242, %cst_43 {dimension_numbers = #tpu.dot_dimension_numbers<[1], [0], [0], [1], [0, 0, 1, 1], [], []>} : vector<2x128xf32>, vector<128x128xf32>, vector<2x128xf32> -> vector<2x128xf32>
    %c0_44 = arith.constant 0 : index
    %c0_45 = arith.constant 0 : index
    %244 = vector.load %arg6[%c0_44, %c0_45] : memref<1x128xf32, #tpu.memory_space<vmem>>, vector<1x128xf32>
    %245 = vector.broadcast %244 : vector<1x128xf32> to vector<2x128xf32>
    %246 = arith.addf %243, %245 : vector<2x128xf32>
    %cst_46 = arith.constant dense<0xFF800000> : vector<2xf32>
    %247 = vector.multi_reduction <maximumf>, %246, %cst_46 [1] : vector<2x128xf32> to vector<2xf32>
    %248 = vector.shape_cast %247 : vector<2xf32> to vector<2x1xf32>
    %249 = vector.broadcast %248 : vector<2x1xf32> to vector<2x128xf32>
    %250 = arith.subf %246, %249 : vector<2x128xf32>
    %251 = math.exp %250 : vector<2x128xf32>
    %cst_47 = arith.constant dense<0.000000e+00> : vector<2xf32>
    %252 = vector.multi_reduction <add>, %251, %cst_47 [1] : vector<2x128xf32> to vector<2xf32>
    %253 = vector.shape_cast %252 : vector<2xf32> to vector<2x1xf32>
    %254 = tpu.reciprocal %253 {approx = true} : vector<2x1xf32> -> vector<2x1xf32>
    %255 = vector.broadcast %254 : vector<2x1xf32> to vector<2x128xf32>
    %256 = arith.mulf %251, %255 : vector<2x128xf32>
    %c0_48 = arith.constant 0 : index
    %c0_49 = arith.constant 0 : index
    %257 = vector.load %arg7[%c0_48, %c0_49] : memref<2x128xf32, #tpu.memory_space<vmem>>, vector<2x128xf32>
    tpu.vector_store %arg7[%c0_48, %c0_49], %256 {strides = array<i32>} : memref<2x128xf32, #tpu.memory_space<vmem>>, vector<2x128xf32>,
    return
  }
  func.func @transform_0(%arg0: i32) -> (i32, i32) {
    %c0_i32 = arith.constant 0 : i32
    %c0_i32_0 = arith.constant 0 : i32
    %c0_i32_1 = arith.constant 0 : i32
    return %c0_i32, %c0_i32_0 : i32, i32
  }
  func.func @transform_1(%arg0: i32) -> (i32, i32) {
    %c0_i32 = arith.constant 0 : i32
    %c0_i32_0 = arith.constant 0 : i32
    %c0_i32_1 = arith.constant 0 : i32
    return %c0_i32, %c0_i32_0 : i32, i32
  }
  func.func @transform_2(%arg0: i32) -> (i32, i32) {
    %c0_i32 = arith.constant 0 : i32
    %c0_i32_0 = arith.constant 0 : i32
    %c0_i32_1 = arith.constant 0 : i32
    return %c0_i32, %c0_i32_0 : i32, i32
  }
  func.func @transform_3(%arg0: i32) -> (i32, i32) {
    %c0_i32 = arith.constant 0 : i32
    %c0_i32_0 = arith.constant 0 : i32
    %c0_i32_1 = arith.constant 0 : i32
    return %c0_i32, %c0_i32_0 : i32, i32
  }
  func.func @transform_4(%arg0: i32) -> (i32, i32) {
    %c0_i32 = arith.constant 0 : i32
    %c0_i32_0 = arith.constant 0 : i32
    %c0_i32_1 = arith.constant 0 : i32
    return %c0_i32, %c0_i32_0 : i32, i32
  }
  func.func @transform_5(%arg0: i32) -> (i32, i32) {
    %c0_i32 = arith.constant 0 : i32
    %c0_i32_0 = arith.constant 0 : i32
    %c0_i32_1 = arith.constant 0 : i32
    return %c0_i32, %c0_i32_0 : i32, i32
  }
  func.func @transform_6(%arg0: i32) -> (i32, i32) {
    %c0_i32 = arith.constant 0 : i32
    %c0_i32_0 = arith.constant 0 : i32
    %c0_i32_1 = arith.constant 0 : i32
    return %c0_i32, %c0_i32_0 : i32, i32
  }
}

</mosaic_0001>

<llo_original>
// kernel: tpu_custom_call.1
$region0: #{tpu_custom_call.1}
  #allocation0 [shape = 'u32[]', space=smem, size = 0x4, offset = 0x4, fixed_abs, tag = 'smem constant byte address 0x4 - core index']
  #allocation1 [shape = 'u32[144,128]{1,0:T(1,128)}', space=vmem, size = 0x12000, scoped, tag = 'internal scratch']
  %s0 = inlined_call_operand.hbm [shape: f32[16,16], index: 0, kind: input, shape index: {}]
  %s1 = inlined_call_operand.hbm [shape: f32[16,512], index: 1, kind: input, shape index: {}]
  %s2 = inlined_call_operand.hbm [shape: f32[128,512], index: 2, kind: input, shape index: {}]
  %s3 = inlined_call_operand.vmem [shape: f32[1,512], index: 3, kind: input, shape index: {}]
  %s4 = inlined_call_operand.hbm [shape: f32[128,128], index: 4, kind: input, shape index: {}]
  %s5 = inlined_call_operand.vmem [shape: f32[1,128], index: 5, kind: input, shape index: {}]
  %s6 = inlined_call_operand.hbm [shape: f32[2,128], index: 6, kind: output, shape index: {}]
  %s7 = sld [smem:[#allocation0]]
  $region50: #{tpu_custom_call.1} parent=0
    _
  %s9 = ssub.s32 1, %s7
  %s10 = scalar_select 0, %s9, %s7
  $region1: #{tpu_custom_call.1} parent=0
    #allocation2 [shape = 'u8[8192]{0}', space=vmem, size = 0x2000, scoped, tag = 'input window, operand 0, single buffered']
    #allocation3 [shape = 's32[1]{0}', space=sflag, size = 0x4, scoped, tag = 'scoped memory for tpu_custom_call.1']
    #allocation4 [shape = 's32[1]{0}', space=sflag, size = 0x4, scoped, tag = 'scoped memory for tpu_custom_call.1']
    #allocation5 [shape = 'u8[32768]{0}', space=vmem, size = 0x8000, scoped, tag = 'input window, operand 1, single buffered']
    #allocation6 [shape = 's32[1]{0}', space=sflag, size = 0x4, scoped, tag = 'scoped memory for tpu_custom_call.1']
    #allocation7 [shape = 'u8[262144]{0}', space=vmem, size = 0x40000, scoped, tag = 'input window, operand 2, single buffered']
    #allocation8 [shape = 'u8[65536]{0}', space=vmem, size = 0x10000, scoped, tag = 'input window, operand 4, single buffered']
    #allocation9 [shape = 's32[1]{0}', space=sflag, size = 0x4, scoped, tag = 'scoped memory for tpu_custom_call.1']
    #allocation10 [shape = 'u8[1024]{0}', space=vmem, size = 0x400, scoped, tag = 'output window, operand 0, single buffered']
    %11 = vsyncpa [#allocation3], 0
    %12 = vsyncpa [#allocation6], 0
    %13 = vsyncpa [#allocation9], 0
    %14 = vsyncpa [#allocation4], 0
    // Predicated region
    $region2: #{tpu_custom_call.1} parent=1 // pred_check
      _
    $region3: #{tpu_custom_call.1} parent=1 // pred_check_branch
      %16 = sbr.rel (0) target = $region5
    $region4: #{tpu_custom_call.1} parent=1 // pred_region
      %s18 = ssub.s32 256, 256
      %19 = vsyncadd [#allocation3], %s18
      %s20 = sshll.u32 [#allocation2], 4
      %s21 = int_to_ptr.vmem [resolvable:$true] %s20
      %26 = dma.hbm_to_vmem [thread:$0]  %s0, 256, %s21, [#allocation3], 128, 128, 8
    $region5: #{tpu_custom_call.1} parent=1 // pred_fallthru
      _
    // Predicated region
    $region6: #{tpu_custom_call.1} parent=1 // pred_check
      _
    $region7: #{tpu_custom_call.1} parent=1 // pred_check_branch
      %28 = sbr.rel (0) target = $region9
    $region8: #{tpu_custom_call.1} parent=1 // pred_region
      %s30 = ssub.s32 1024, 1024
      %31 = vsyncadd [#allocation6], %s30
      %s32 = sshll.u32 [#allocation5], 4
      %s33 = int_to_ptr.vmem [resolvable:$true] %s32
      %38 = dma.hbm_to_vmem [thread:$0]  %s1, 1024, %s33, [#allocation6], 512, 512, 32
    $region9: #{tpu_custom_call.1} parent=1 // pred_fallthru
      _
    // Predicated region
    $region10: #{tpu_custom_call.1} parent=1 // pred_check
      _
    $region11: #{tpu_custom_call.1} parent=1 // pred_check_branch
      %40 = sbr.rel (0) target = $region13
    $region12: #{tpu_custom_call.1} parent=1 // pred_region
      %s42 = ssub.s32 8192, 8192
      %43 = vsyncadd [#allocation6], %s42
      %s44 = sshll.u32 [#allocation7], 4
      %s45 = int_to_ptr.vmem [resolvable:$true] %s44
      %50 = dma.hbm_to_vmem [thread:$0]  %s2, 8192, %s45, [#allocation6], 512, 512, 32
    $region13: #{tpu_custom_call.1} parent=1 // pred_fallthru
      _
    // Predicated region
    $region14: #{tpu_custom_call.1} parent=1 // pred_check
      _
    $region15: #{tpu_custom_call.1} parent=1 // pred_check_branch
      %52 = sbr.rel (0) target = $region17
    $region16: #{tpu_custom_call.1} parent=1 // pred_region
      _
    $region17: #{tpu_custom_call.1} parent=1 // pred_fallthru
      _
    // Predicated region
    $region18: #{tpu_custom_call.1} parent=1 // pred_check
      _
    $region19: #{tpu_custom_call.1} parent=1 // pred_check_branch
      %54 = sbr.rel (0) target = $region21
    $region20: #{tpu_custom_call.1} parent=1 // pred_region
      %s56 = ssub.s32 2048, 2048
      %57 = vsyncadd [#allocation9], %s56
      %s58 = sshll.u32 [#allocation8], 4
      %s59 = int_to_ptr.vmem [resolvable:$true] %s58
      %64 = dma.hbm_to_vmem [thread:$0]  %s4, 2048, %s59, [#allocation9], 128, 128, 8
    $region21: #{tpu_custom_call.1} parent=1 // pred_fallthru
      _
    // Predicated region
    $region22: #{tpu_custom_call.1} parent=1 // pred_check
      _
    $region23: #{tpu_custom_call.1} parent=1 // pred_check_branch
      %66 = sbr.rel (0) target = $region25
    $region24: #{tpu_custom_call.1} parent=1 // pred_region
      _
    $region25: #{tpu_custom_call.1} parent=1 // pred_fallthru
      _
    // Predicated region
    $region26: #{tpu_custom_call.1} parent=1 // pred_check
      _
    $region27: #{tpu_custom_call.1} parent=1 // pred_check_branch
      %68 = sbr.rel (0) target = $region29
    $region28: #{tpu_custom_call.1} parent=1 // pred_region
      %69 = dma.done [#allocation3], 256
    $region29: #{tpu_custom_call.1} parent=1 // pred_fallthru
      _
    // Predicated region
    $region30: #{tpu_custom_call.1} parent=1 // pred_check
      _
    $region31: #{tpu_custom_call.1} parent=1 // pred_check_branch
      %71 = sbr.rel (0) target = $region33
    $region32: #{tpu_custom_call.1} parent=1 // pred_region
      %72 = dma.done [#allocation6], 1024
    $region33: #{tpu_custom_call.1} parent=1 // pred_fallthru
      _
    // Predicated region
    $region34: #{tpu_custom_call.1} parent=1 // pred_check
      _
    $region35: #{tpu_custom_call.1} parent=1 // pred_check_branch
      %74 = sbr.rel (0) target = $region37
    $region36: #{tpu_custom_call.1} parent=1 // pred_region
      %75 = dma.done [#allocation6], 8192
    $region37: #{tpu_custom_call.1} parent=1 // pred_fallthru
      _
    // Predicated region
    $region38: #{tpu_custom_call.1} parent=1 // pred_check
      _
    $region39: #{tpu_custom_call.1} parent=1 // pred_check_branch
      %77 = sbr.rel (0) target = $region41
    $region40: #{tpu_custom_call.1} parent=1 // pred_region
      %78 = dma.done [#allocation9], 2048
    $region41: #{tpu_custom_call.1} parent=1 // pred_fallthru
      _
    %v79 = vld [vmem:[#allocation2] sm:$0xff]
    %v80 = vld [vmem:[#allocation2 + $0x8] sm:$0xff]
    %v81 = vld [vmem:[#allocation5] sm:$0xff]
    %v82 = vld [vmem:[#allocation5 + $0x8] sm:$0xff]
    %v83 = vld [vmem:[#allocation5 + $0x10] sm:$0xff]
    %v84 = vld [vmem:[#allocation5 + $0x18] sm:$0xff]
    %v85 = vld [vmem:[#allocation5 + $0x20] sm:$0xff]
    %v86 = vld [vmem:[#allocation5 + $0x28] sm:$0xff]
    %v87 = vld [vmem:[#allocation5 + $0x30] sm:$0xff]
    %v88 = vld [vmem:[#allocation5 + $0x38] sm:$0xff]
    %v89 = vld [vmem:[%s3] sm:$0xf]
    %v91 = vlaneseq
    %v92 = vshrl.u32 %v91, 7
    %v93 = vsub.s32 0, %v92
    %v94 = vrot.slane %v89, %v93
    %v95 = vlaneseq
    %v96 = vshrl.u32 %v95, 7
    %v97 = vsub.s32 1, %v96
    %v98 = vrot.slane %v89, %v97
    %v99 = vlaneseq
    %v100 = vshrl.u32 %v99, 7
    %v101 = vsub.s32 2, %v100
    %v102 = vrot.slane %v89, %v101
    %v103 = vlaneseq
    %v104 = vshrl.u32 %v103, 7
    %v105 = vsub.s32 3, %v104
    %v106 = vrot.slane %v89, %v105
    %vm111 = vcmask 130048
    %v113 = vsel %vm111, %v79, 0
    %v116 = vsel %vm111, %v80, 0
    %118 = vmatprep.subr.mxu0 %v82
    %119 = vmatpush1.msra.mxu0 %v81
    %120 = vmatprep.subr.mxu0 %v86
    %121 = vmatpush1.msra.mxu0 %v85
    %122 = vmatprep.subr.mxu0 0.0
    %123 = vmatpush1.msra.mxu0 0.0
    %124 = vmatprep.subr.mxu0 0.0
    %125 = vmatpush1.msra.mxu0 0.0
    %126 = vmatprep.subr.mxu0 0.0
    %127 = vmatpush1.msra.mxu0 0.0
    %128 = vmatprep.subr.mxu0 0.0
    %129 = vmatpush1.msra.mxu0 0.0
    %130 = vmatprep.subr.mxu0 0.0
    %131 = vmatpush1.msra.mxu0 0.0
    %132 = vmatprep.subr.mxu0 0.0
    %133 = vmatpush1.msra.mxu0 0.0
    %134 = vmatprep.subr.mxu0 0.0
    %135 = vmatpush1.msra.mxu0 0.0
    %136 = vmatprep.subr.mxu0 0.0
    %137 = vmatpush1.msra.mxu0 0.0
    %138 = vmatprep.subr.mxu0 0.0
    %139 = vmatpush1.msra.mxu0 0.0
    %140 = vmatprep.subr.mxu0 0.0
    %141 = vmatpush1.msra.mxu0 0.0
    %142 = vmatprep.subr.mxu0 0.0
    %143 = vmatpush1.msra.mxu0 0.0
    %144 = vmatprep.subr.mxu0 0.0
    %145 = vmatpush1.msra.mxu0 0.0
    %146 = vmatprep.subr.mxu0 0.0
    %147 = vmatpush1.msra.mxu0 0.0
    %148 = vmatprep.subr.mxu0 0.0
    %149 = vmatpush1.msra.mxu0 0.0
    %150 = vmatprep.subr.mxu0 0.0
    %151 = vmatpush1.msra.mxu0 0.0
    %152 = vmatprep.subr.mxu0 0.0
    %153 = vmatpush1.msra.mxu0 0.0
    %154 = vmatprep.subr.mxu0 0.0
    %155 = vmatpush1.msra.mxu0 0.0
    %156 = vmatprep.subr.mxu0 0.0
    %157 = vmatpush1.msra.mxu0 0.0
    %158 = vmatprep.subr.mxu0 0.0
    %159 = vmatpush1.msra.mxu0 0.0
    %160 = vmatprep.subr.mxu0 0.0
    %161 = vmatpush1.msra.mxu0 0.0
    %162 = vmatprep.subr.mxu0 0.0
    %163 = vmatpush1.msra.mxu0 0.0
    %164 = vmatprep.subr.mxu0 0.0
    %165 = vmatpush1.msra.mxu0 0.0
    %166 = vmatprep.subr.mxu0 0.0
    %167 = vmatpush1.msra.mxu0 0.0
    %168 = vmatprep.subr.mxu0 0.0
    %169 = vmatpush1.msra.mxu0 0.0
    %170 = vmatprep.subr.mxu0 0.0
    %171 = vmatpush1.msra.mxu0 0.0
    %172 = vmatprep.subr.mxu0 0.0
    %173 = vmatpush1.msra.mxu0 0.0
    %174 = vmatprep.subr.mxu0 0.0
    %175 = vmatpush1.msra.mxu0 0.0
    %176 = vmatprep.subr.mxu0 0.0
    %177 = vmatpush1.msra.mxu0 0.0
    %178 = vmatprep.subr.mxu0 0.0
    %179 = vmatpush1.msra.mxu0 0.0
    %180 = vmatprep.subr.mxu0 0.0
    %181 = vmatpush1.msra.mxu0 0.0
    %182 = vmatprep.mubr.f32.mxu0 0.0
    %183 = vmatmul.mubr.f32.gmra.mrb[0].mxu0 %v113
    %v184 = vpop.f32.mrb[0].mxu0
    %v185 = vadd.f32 %v94, %v184
    %v186 = vpop.f32.mrb[0].mxu0
    %v187 = vadd.f32 %v98, %v186
    %188 = vmatprep.mubr.f32.mxu0 0.0
    %189 = vmatmul.mubr.f32.gmra.mrb[0].mxu0 %v116
    %v190 = vpop.f32.mrb[0].mxu0
    %v191 = vadd.f32 %v94, %v190
    %v192 = vpop.f32.mrb[0].mxu0
    %v193 = vadd.f32 %v98, %v192
    %194 = vdwg.mxu0
    %195 = vmatprep.subr.mxu0 %v84
    %196 = vmatpush1.msra.mxu0 %v83
    %197 = vmatprep.subr.mxu0 %v88
    %198 = vmatpush1.msra.mxu0 %v87
    %199 = vmatprep.subr.mxu0 0.0
    %200 = vmatpush1.msra.mxu0 0.0
    %201 = vmatprep.subr.mxu0 0.0
    %202 = vmatpush1.msra.mxu0 0.0
    %203 = vmatprep.subr.mxu0 0.0
    %204 = vmatpush1.msra.mxu0 0.0
    %205 = vmatprep.subr.mxu0 0.0
    %206 = vmatpush1.msra.mxu0 0.0
    %207 = vmatprep.subr.mxu0 0.0
    %208 = vmatpush1.msra.mxu0 0.0
    %209 = vmatprep.subr.mxu0 0.0
    %210 = vmatpush1.msra.mxu0 0.0
    %211 = vmatprep.subr.mxu0 0.0
    %212 = vmatpush1.msra.mxu0 0.0
    %213 = vmatprep.subr.mxu0 0.0
    %214 = vmatpush1.msra.mxu0 0.0
    %215 = vmatprep.subr.mxu0 0.0
    %216 = vmatpush1.msra.mxu0 0.0
    %217 = vmatprep.subr.mxu0 0.0
    %218 = vmatpush1.msra.mxu0 0.0
    %219 = vmatprep.subr.mxu0 0.0
    %220 = vmatpush1.msra.mxu0 0.0
    %221 = vmatprep.subr.mxu0 0.0
    %222 = vmatpush1.msra.mxu0 0.0
    %223 = vmatprep.subr.mxu0 0.0
    %224 = vmatpush1.msra.mxu0 0.0
    %225 = vmatprep.subr.mxu0 0.0
    %226 = vmatpush1.msra.mxu0 0.0
    %227 = vmatprep.subr.mxu0 0.0
    %228 = vmatpush1.msra.mxu0 0.0
    %229 = vmatprep.subr.mxu0 0.0
    %230 = vmatpush1.msra.mxu0 0.0
    %231 = vmatprep.subr.mxu0 0.0
    %232 = vmatpush1.msra.mxu0 0.0
    %233 = vmatprep.subr.mxu0 0.0
    %234 = vmatpush1.msra.mxu0 0.0
    %235 = vmatprep.subr.mxu0 0.0
    %236 = vmatpush1.msra.mxu0 0.0
    %237 = vmatprep.subr.mxu0 0.0
    %238 = vmatpush1.msra.mxu0 0.0
    %239 = vmatprep.subr.mxu0 0.0
    %240 = vmatpush1.msra.mxu0 0.0
    %241 = vmatprep.subr.mxu0 0.0
    %242 = vmatpush1.msra.mxu0 0.0
    %243 = vmatprep.subr.mxu0 0.0
    %244 = vmatpush1.msra.mxu0 0.0
    %245 = vmatprep.subr.mxu0 0.0
    %246 = vmatpush1.msra.mxu0 0.0
    %247 = vmatprep.subr.mxu0 0.0
    %248 = vmatpush1.msra.mxu0 0.0
    %249 = vmatprep.subr.mxu0 0.0
    %250 = vmatpush1.msra.mxu0 0.0
    %251 = vmatprep.subr.mxu0 0.0
    %252 = vmatpush1.msra.mxu0 0.0
    %253 = vmatprep.subr.mxu0 0.0
    %254 = vmatpush1.msra.mxu0 0.0
    %255 = vmatprep.subr.mxu0 0.0
    %256 = vmatpush1.msra.mxu0 0.0
    %257 = vmatprep.subr.mxu0 0.0
    %258 = vmatpush1.msra.mxu0 0.0
    %259 = vmatprep.mubr.f32.mxu0 0.0
    %260 = vmatmul.mubr.f32.gmra.mrb[0].mxu0 %v113
    %v261 = vpop.f32.mrb[0].mxu0
    %v262 = vadd.f32 %v102, %v261
    %v263 = vpop.f32.mrb[0].mxu0
    %v264 = vadd.f32 %v106, %v263
    %265 = vmatprep.mubr.f32.mxu0 0.0
    %266 = vmatmul.mubr.f32.gmra.mrb[0].mxu0 %v116
    %v267 = vpop.f32.mrb[0].mxu0
    %v268 = vadd.f32 %v102, %v267
    %v269 = vpop.f32.mrb[0].mxu0
    %v270 = vadd.f32 %v106, %v269
    %271 = vdwg.mxu0
    %v272 = vld [vmem:[#allocation7] sm:$0xff]
    %v273 = vld [vmem:[#allocation7 + $0x8] sm:$0xff]
    %v274 = vld [vmem:[#allocation7 + $0x10] sm:$0xff]
    %v275 = vld [vmem:[#allocation7 + $0x18] sm:$0xff]
    %v276 = vld [vmem:[#allocation7 + $0x20] sm:$0xff]
    %v277 = vld [vmem:[#allocation7 + $0x28] sm:$0xff]
    %v278 = vld [vmem:[#allocation7 + $0x30] sm:$0xff]
    %v279 = vld [vmem:[#allocation7 + $0x38] sm:$0xff]
    %v280 = vld [vmem:[#allocation7 + $0x40] sm:$0xff]
    %v281 = vld [vmem:[#allocation7 + $0x48] sm:$0xff]
    %v282 = vld [vmem:[#allocation7 + $0x50] sm:$0xff]
    %v283 = vld [vmem:[#allocation7 + $0x58] sm:$0xff]
    %v284 = vld [vmem:[#allocation7 + $0x60] sm:$0xff]
    %v285 = vld [vmem:[#allocation7 + $0x68] sm:$0xff]
    %v286 = vld [vmem:[#allocation7 + $0x70] sm:$0xff]
    %v287 = vld [vmem:[#allocation7 + $0x78] sm:$0xff]
    %v288 = vld [vmem:[#allocation7 + $0x80] sm:$0xff]
    %v289 = vld [vmem:[#allocation7 + $0x88] sm:$0xff]
    %v290 = vld [vmem:[#allocation7 + $0x90] sm:$0xff]
    %v291 = vld [vmem:[#allocation7 + $0x98] sm:$0xff]
    %v292 = vld [vmem:[#allocation7 + $0xa0] sm:$0xff]
    %v293 = vld [vmem:[#allocation7 + $0xa8] sm:$0xff]
    %v294 = vld [vmem:[#allocation7 + $0xb0] sm:$0xff]
    %v295 = vld [vmem:[#allocation7 + $0xb8] sm:$0xff]
    %v296 = vld [vmem:[#allocation7 + $0xc0] sm:$0xff]
    %v297 = vld [vmem:[#allocation7 + $0xc8] sm:$0xff]
    %v298 = vld [vmem:[#allocation7 + $0xd0] sm:$0xff]
    %v299 = vld [vmem:[#allocation7 + $0xd8] sm:$0xff]
    %v300 = vld [vmem:[#allocation7 + $0xe0] sm:$0xff]
    %v301 = vld [vmem:[#allocation7 + $0xe8] sm:$0xff]
    %v302 = vld [vmem:[#allocation7 + $0xf0] sm:$0xff]
    %v303 = vld [vmem:[#allocation7 + $0xf8] sm:$0xff]
    %v304 = vld [vmem:[#allocation7 + $0x100] sm:$0xff]
    %v305 = vld [vmem:[#allocation7 + $0x108] sm:$0xff]
    %v306 = vld [vmem:[#allocation7 + $0x110] sm:$0xff]
    %v307 = vld [vmem:[#allocation7 + $0x118] sm:$0xff]
    %v308 = vld [vmem:[#allocation7 + $0x120] sm:$0xff]
    %v309 = vld [vmem:[#allocation7 + $0x128] sm:$0xff]
    %v310 = vld [vmem:[#allocation7 + $0x130] sm:$0xff]
    %v311 = vld [vmem:[#allocation7 + $0x138] sm:$0xff]
    %v312 = vld [vmem:[#allocation7 + $0x140] sm:$0xff]
    %v313 = vld [vmem:[#allocation7 + $0x148] sm:$0xff]
    %v314 = vld [vmem:[#allocation7 + $0x150] sm:$0xff]
    %v315 = vld [vmem:[#allocation7 + $0x158] sm:$0xff]
    %v316 = vld [vmem:[#allocation7 + $0x160] sm:$0xff]
    %v317 = vld [vmem:[#allocation7 + $0x168] sm:$0xff]
    %v318 = vld [vmem:[#allocation7 + $0x170] sm:$0xff]
    %v319 = vld [vmem:[#allocation7 + $0x178] sm:$0xff]
    %v320 = vld [vmem:[#allocation7 + $0x180] sm:$0xff]
    %v321 = vld [vmem:[#allocation7 + $0x188] sm:$0xff]
    %v322 = vld [vmem:[#allocation7 + $0x190] sm:$0xff]
    %v323 = vld [vmem:[#allocation7 + $0x198] sm:$0xff]
    %v324 = vld [vmem:[#allocation7 + $0x1a0] sm:$0xff]
    %v325 = vld [vmem:[#allocation7 + $0x1a8] sm:$0xff]
    %v326 = vld [vmem:[#allocation7 + $0x1b0] sm:$0xff]
    %v327 = vld [vmem:[#allocation7 + $0x1b8] sm:$0xff]
    %v328 = vld [vmem:[#allocation7 + $0x1c0] sm:$0xff]
    %v329 = vld [vmem:[#allocation7 + $0x1c8] sm:$0xff]
    %v330 = vld [vmem:[#allocation7 + $0x1d0] sm:$0xff]
    %v331 = vld [vmem:[#allocation7 + $0x1d8] sm:$0xff]
    %v332 = vld [vmem:[#allocation7 + $0x1e0] sm:$0xff]
    %v333 = vld [vmem:[#allocation7 + $0x1e8] sm:$0xff]
    %v334 = vld [vmem:[#allocation7 + $0x1f0] sm:$0xff]
    %v335 = vld [vmem:[#allocation7 + $0x1f8] sm:$0xff]
    %336 = vmatprep.subr.mxu0 %v273
    %337 = vmatpush1.msra.mxu0 %v272
    %338 = vmatprep.subr.mxu0 %v277
    %339 = vmatpush1.msra.mxu0 %v276
    %340 = vmatprep.subr.mxu0 %v281
    %341 = vmatpush1.msra.mxu0 %v280
    %342 = vmatprep.subr.mxu0 %v285
    %343 = vmatpush1.msra.mxu0 %v284
    %344 = vmatprep.subr.mxu0 %v289
    %345 = vmatpush1.msra.mxu0 %v288
    %346 = vmatprep.subr.mxu0 %v293
    %347 = vmatpush1.msra.mxu0 %v292
    %348 = vmatprep.subr.mxu0 %v297
    %349 = vmatpush1.msra.mxu0 %v296
    %350 = vmatprep.subr.mxu0 %v301
    %351 = vmatpush1.msra.mxu0 %v300
    %352 = vmatprep.subr.mxu0 %v305
    %353 = vmatpush1.msra.mxu0 %v304
    %354 = vmatprep.subr.mxu0 %v309
    %355 = vmatpush1.msra.mxu0 %v308
    %356 = vmatprep.subr.mxu0 %v313
    %357 = vmatpush1.msra.mxu0 %v312
    %358 = vmatprep.subr.mxu0 %v317
    %359 = vmatpush1.msra.mxu0 %v316
    %360 = vmatprep.subr.mxu0 %v321
    %361 = vmatpush1.msra.mxu0 %v320
    %362 = vmatprep.subr.mxu0 %v325
    %363 = vmatpush1.msra.mxu0 %v324
    %364 = vmatprep.subr.mxu0 %v329
    %365 = vmatpush1.msra.mxu0 %v328
    %366 = vmatprep.subr.mxu0 %v333
    %367 = vmatpush1.msra.mxu0 %v332
    %368 = vmatprep.subr.mxu0 0.0
    %369 = vmatpush1.msra.mxu0 0.0
    %370 = vmatprep.subr.mxu0 0.0
    %371 = vmatpush1.msra.mxu0 0.0
    %372 = vmatprep.subr.mxu0 0.0
    %373 = vmatpush1.msra.mxu0 0.0
    %374 = vmatprep.subr.mxu0 0.0
    %375 = vmatpush1.msra.mxu0 0.0
    %376 = vmatprep.subr.mxu0 0.0
    %377 = vmatpush1.msra.mxu0 0.0
    %378 = vmatprep.subr.mxu0 0.0
    %379 = vmatpush1.msra.mxu0 0.0
    %380 = vmatprep.subr.mxu0 0.0
    %381 = vmatpush1.msra.mxu0 0.0
    %382 = vmatprep.subr.mxu0 0.0
    %383 = vmatpush1.msra.mxu0 0.0
    %384 = vmatprep.subr.mxu0 0.0
    %385 = vmatpush1.msra.mxu0 0.0
    %386 = vmatprep.subr.mxu0 0.0
    %387 = vmatpush1.msra.mxu0 0.0
    %388 = vmatprep.subr.mxu0 0.0
    %389 = vmatpush1.msra.mxu0 0.0
    %390 = vmatprep.subr.mxu0 0.0
    %391 = vmatpush1.msra.mxu0 0.0
    %392 = vmatprep.subr.mxu0 0.0
    %393 = vmatpush1.msra.mxu0 0.0
    %394 = vmatprep.subr.mxu0 0.0
    %395 = vmatpush1.msra.mxu0 0.0
    %396 = vmatprep.subr.mxu0 0.0
    %397 = vmatpush1.msra.mxu0 0.0
    %398 = vmatprep.subr.mxu0 0.0
    %399 = vmatpush1.msra.mxu0 0.0
    %400 = vmatprep.mubr.f32.mxu0 0.0
    %401 = vmatmul.mubr.f32.gmra.mrb[0].mxu0 0.0
    %v402 = vpop.f32.mrb[0].mxu0
    %v403 = vadd.f32 0.0, %v402
    %v404 = vpop.f32.mrb[0].mxu0
    %v405 = vadd.f32 0.0, %v404
    %406 = vdwg.mxu0
    %407 = vmatprep.subr.mxu0 %v275
    %408 = vmatpush1.msra.mxu0 %v274
    %409 = vmatprep.subr.mxu0 %v279
    %410 = vmatpush1.msra.mxu0 %v278
    %411 = vmatprep.subr.mxu0 %v283
    %412 = vmatpush1.msra.mxu0 %v282
    %413 = vmatprep.subr.mxu0 %v287
    %414 = vmatpush1.msra.mxu0 %v286
    %415 = vmatprep.subr.mxu0 %v291
    %416 = vmatpush1.msra.mxu0 %v290
    %417 = vmatprep.subr.mxu0 %v295
    %418 = vmatpush1.msra.mxu0 %v294
    %419 = vmatprep.subr.mxu0 %v299
    %420 = vmatpush1.msra.mxu0 %v298
    %421 = vmatprep.subr.mxu0 %v303
    %422 = vmatpush1.msra.mxu0 %v302
    %423 = vmatprep.subr.mxu0 %v307
    %424 = vmatpush1.msra.mxu0 %v306
    %425 = vmatprep.subr.mxu0 %v311
    %426 = vmatpush1.msra.mxu0 %v310
    %427 = vmatprep.subr.mxu0 %v315
    %428 = vmatpush1.msra.mxu0 %v314
    %429 = vmatprep.subr.mxu0 %v319
    %430 = vmatpush1.msra.mxu0 %v318
    %431 = vmatprep.subr.mxu0 %v323
    %432 = vmatpush1.msra.mxu0 %v322
    %433 = vmatprep.subr.mxu0 %v327
    %434 = vmatpush1.msra.mxu0 %v326
    %435 = vmatprep.subr.mxu0 %v331
    %436 = vmatpush1.msra.mxu0 %v330
    %437 = vmatprep.subr.mxu0 %v335
    %438 = vmatpush1.msra.mxu0 %v334
    %439 = vmatprep.subr.mxu0 0.0
    %440 = vmatpush1.msra.mxu0 0.0
    %441 = vmatprep.subr.mxu0 0.0
    %442 = vmatpush1.msra.mxu0 0.0
    %443 = vmatprep.subr.mxu0 0.0
    %444 = vmatpush1.msra.mxu0 0.0
    %445 = vmatprep.subr.mxu0 0.0
    %446 = vmatpush1.msra.mxu0 0.0
    %447 = vmatprep.subr.mxu0 0.0
    %448 = vmatpush1.msra.mxu0 0.0
    %449 = vmatprep.subr.mxu0 0.0
    %450 = vmatpush1.msra.mxu0 0.0
    %451 = vmatprep.subr.mxu0 0.0
    %452 = vmatpush1.msra.mxu0 0.0
    %453 = vmatprep.subr.mxu0 0.0
    %454 = vmatpush1.msra.mxu0 0.0
    %455 = vmatprep.subr.mxu0 0.0
    %456 = vmatpush1.msra.mxu0 0.0
    %457 = vmatprep.subr.mxu0 0.0
    %458 = vmatpush1.msra.mxu0 0.0
    %459 = vmatprep.subr.mxu0 0.0
    %460 = vmatpush1.msra.mxu0 0.0
    %461 = vmatprep.subr.mxu0 0.0
    %462 = vmatpush1.msra.mxu0 0.0
    %463 = vmatprep.subr.mxu0 0.0
    %464 = vmatpush1.msra.mxu0 0.0
    %465 = vmatprep.subr.mxu0 0.0
    %466 = vmatpush1.msra.mxu0 0.0
    %467 = vmatprep.subr.mxu0 0.0
    %468 = vmatpush1.msra.mxu0 0.0
    %469 = vmatprep.subr.mxu0 0.0
    %470 = vmatpush1.msra.mxu0 0.0
    %471 = vmatprep.mubr.f32.mxu0 0.0
    %472 = vmatmul.mubr.f32.gmra.mrb[0].mxu0 0.0
    %v473 = vpop.f32.mrb[0].mxu0
    %v474 = vadd.f32 0.0, %v473
    %v475 = vpop.f32.mrb[0].mxu0
    %v476 = vadd.f32 0.0, %v475
    %477 = vdwg.mxu0
    %v482 = vrot.slane %v403, 1
    %v483 = vrot.slane %v405, 1
    %v484 = vrot.slane %v474, 1
    %v485 = vrot.slane %v476, 1
    %v494 = vadd.f32 %v185, %v403
    %v495 = vadd.f32 %v187, %v405
    %v496 = vadd.f32 %v262, %v474
    %v497 = vadd.f32 %v264, %v476
    %v498 = vadd.f32 %v191, %v482
    %v499 = vadd.f32 %v193, %v483
    %v500 = vadd.f32 %v268, %v484
    %v501 = vadd.f32 %v270, %v485
    %v502 = vxor.u32 %v494, 2147483648
    %v503 = vxor.u32 %v498, 2147483648
    %v504 = vmul.f32 %v502, 1.442695
    %v505 = vpow.pop %v504
    %v506 = vmul.f32 %v503, 1.442695
    %v507 = vpow.pop %v506
    %v508 = vadd.f32 %v505, 1.0
    %v509 = vadd.f32 %v507, 1.0
    %v510 = vrcp.pop %v508
    %v511 = vmul.f32 1.0, %v510
    %v512 = vrcp.pop %v509
    %v513 = vmul.f32 1.0, %v512
    %v514 = vxor.u32 %v495, 2147483648
    %v515 = vxor.u32 %v499, 2147483648
    %v516 = vmul.f32 %v514, 1.442695
    %v517 = vpow.pop %v516
    %v518 = vmul.f32 %v515, 1.442695
    %v519 = vpow.pop %v518
    %v520 = vadd.f32 %v517, 1.0
    %v521 = vadd.f32 %v519, 1.0
    %v522 = vrcp.pop %v520
    %v523 = vmul.f32 1.0, %v522
    %v524 = vrcp.pop %v521
    %v525 = vmul.f32 1.0, %v524
    %v526 = vtanh.pop %v496
    %v527 = vtanh.pop %v500
    %v528 = vxor.u32 %v497, 2147483648
    %v529 = vxor.u32 %v501, 2147483648
    %v530 = vmul.f32 %v528, 1.442695
    %v531 = vpow.pop %v530
    %v532 = vmul.f32 %v529, 1.442695
    %v533 = vpow.pop %v532
    %v534 = vadd.f32 %v531, 1.0
    %v535 = vadd.f32 %v533, 1.0
    %v536 = vrcp.pop %v534
    %v537 = vmul.f32 1.0, %v536
    %v538 = vrcp.pop %v535
    %v539 = vmul.f32 1.0, %v538
    %v540 = vmul.f32 %v523, 0.0
    %v541 = vmul.f32 %v525, 0.0
    %v542 = vmul.f32 %v511, %v526
    %v543 = vmul.f32 %v513, %v527
    %v544 = vadd.f32 %v540, %v542
    %v545 = vadd.f32 %v541, %v543
    %v546 = vtanh.pop %v544
    %v547 = vtanh.pop %v545
    %v548 = vmul.f32 %v537, %v546
    %v549 = vmul.f32 %v539, %v547
    %v552 = vrot.slane %v549, 7
    %vm553 = vcmask 1041409
    %v554 = vsel %vm553, %v552, %v548
    %556 = vmatprep.subr.mxu0 %v273
    %557 = vmatpush1.msra.mxu0 %v272
    %558 = vmatprep.subr.mxu0 %v277
    %559 = vmatpush1.msra.mxu0 %v276
    %560 = vmatprep.subr.mxu0 %v281
    %561 = vmatpush1.msra.mxu0 %v280
    %562 = vmatprep.subr.mxu0 %v285
    %563 = vmatpush1.msra.mxu0 %v284
    %564 = vmatprep.subr.mxu0 %v289
    %565 = vmatpush1.msra.mxu0 %v288
    %566 = vmatprep.subr.mxu0 %v293
    %567 = vmatpush1.msra.mxu0 %v292
    %568 = vmatprep.subr.mxu0 %v297
    %569 = vmatpush1.msra.mxu0 %v296
    %570 = vmatprep.subr.mxu0 %v301
    %571 = vmatpush1.msra.mxu0 %v300
    %572 = vmatprep.subr.mxu0 %v305
    %573 = vmatpush1.msra.mxu0 %v304
    %574 = vmatprep.subr.mxu0 %v309
    %575 = vmatpush1.msra.mxu0 %v308
    %576 = vmatprep.subr.mxu0 %v313
    %577 = vmatpush1.msra.mxu0 %v312
    %578 = vmatprep.subr.mxu0 %v317
    %579 = vmatpush1.msra.mxu0 %v316
    %580 = vmatprep.subr.mxu0 %v321
    %581 = vmatpush1.msra.mxu0 %v320
    %582 = vmatprep.subr.mxu0 %v325
    %583 = vmatpush1.msra.mxu0 %v324
    %584 = vmatprep.subr.mxu0 %v329
    %585 = vmatpush1.msra.mxu0 %v328
    %586 = vmatprep.subr.mxu0 %v333
    %587 = vmatpush1.msra.mxu0 %v332
    %588 = vmatprep.subr.mxu0 0.0
    %589 = vmatpush1.msra.mxu0 0.0
    %590 = vmatprep.subr.mxu0 0.0
    %591 = vmatpush1.msra.mxu0 0.0
    %592 = vmatprep.subr.mxu0 0.0
    %593 = vmatpush1.msra.mxu0 0.0
    %594 = vmatprep.subr.mxu0 0.0
    %595 = vmatpush1.msra.mxu0 0.0
    %596 = vmatprep.subr.mxu0 0.0
    %597 = vmatpush1.msra.mxu0 0.0
    %598 = vmatprep.subr.mxu0 0.0
    %599 = vmatpush1.msra.mxu0 0.0
    %600 = vmatprep.subr.mxu0 0.0
    %601 = vmatpush1.msra.mxu0 0.0
    %602 = vmatprep.subr.mxu0 0.0
    %603 = vmatpush1.msra.mxu0 0.0
    %604 = vmatprep.subr.mxu0 0.0
    %605 = vmatpush1.msra.mxu0 0.0
    %606 = vmatprep.subr.mxu0 0.0
    %607 = vmatpush1.msra.mxu0 0.0
    %608 = vmatprep.subr.mxu0 0.0
    %609 = vmatpush1.msra.mxu0 0.0
    %610 = vmatprep.subr.mxu0 0.0
    %611 = vmatpush1.msra.mxu0 0.0
    %612 = vmatprep.subr.mxu0 0.0
    %613 = vmatpush1.msra.mxu0 0.0
    %614 = vmatprep.subr.mxu0 0.0
    %615 = vmatpush1.msra.mxu0 0.0
    %616 = vmatprep.subr.mxu0 0.0
    %617 = vmatpush1.msra.mxu0 0.0
    %618 = vmatprep.subr.mxu0 0.0
    %619 = vmatpush1.msra.mxu0 0.0
    %620 = vmatprep.mubr.f32.mxu0 0.0
    %621 = vmatmul.mubr.f32.gmra.mrb[0].mxu0 %v554
    %v622 = vpop.f32.mrb[0].mxu0
    %v623 = vadd.f32 0.0, %v622
    %v624 = vpop.f32.mrb[0].mxu0
    %v625 = vadd.f32 0.0, %v624
    %626 = vdwg.mxu0
    %627 = vmatprep.subr.mxu0 %v275
    %628 = vmatpush1.msra.mxu0 %v274
    %629 = vmatprep.subr.mxu0 %v279
    %630 = vmatpush1.msra.mxu0 %v278
    %631 = vmatprep.subr.mxu0 %v283
    %632 = vmatpush1.msra.mxu0 %v282
    %633 = vmatprep.subr.mxu0 %v287
    %634 = vmatpush1.msra.mxu0 %v286
    %635 = vmatprep.subr.mxu0 %v291
    %636 = vmatpush1.msra.mxu0 %v290
    %637 = vmatprep.subr.mxu0 %v295
    %638 = vmatpush1.msra.mxu0 %v294
    %639 = vmatprep.subr.mxu0 %v299
    %640 = vmatpush1.msra.mxu0 %v298
    %641 = vmatprep.subr.mxu0 %v303
    %642 = vmatpush1.msra.mxu0 %v302
    %643 = vmatprep.subr.mxu0 %v307
    %644 = vmatpush1.msra.mxu0 %v306
    %645 = vmatprep.subr.mxu0 %v311
    %646 = vmatpush1.msra.mxu0 %v310
    %647 = vmatprep.subr.mxu0 %v315
    %648 = vmatpush1.msra.mxu0 %v314
    %649 = vmatprep.subr.mxu0 %v319
    %650 = vmatpush1.msra.mxu0 %v318
    %651 = vmatprep.subr.mxu0 %v323
    %652 = vmatpush1.msra.mxu0 %v322
    %653 = vmatprep.subr.mxu0 %v327
    %654 = vmatpush1.msra.mxu0 %v326
    %655 = vmatprep.subr.mxu0 %v331
    %656 = vmatpush1.msra.mxu0 %v330
    %657 = vmatprep.subr.mxu0 %v335
    %658 = vmatpush1.msra.mxu0 %v334
    %659 = vmatprep.subr.mxu0 0.0
    %660 = vmatpush1.msra.mxu0 0.0
    %661 = vmatprep.subr.mxu0 0.0
    %662 = vmatpush1.msra.mxu0 0.0
    %663 = vmatprep.subr.mxu0 0.0
    %664 = vmatpush1.msra.mxu0 0.0
    %665 = vmatprep.subr.mxu0 0.0
    %666 = vmatpush1.msra.mxu0 0.0
    %667 = vmatprep.subr.mxu0 0.0
    %668 = vmatpush1.msra.mxu0 0.0
    %669 = vmatprep.subr.mxu0 0.0
    %670 = vmatpush1.msra.mxu0 0.0
    %671 = vmatprep.subr.mxu0 0.0
    %672 = vmatpush1.msra.mxu0 0.0
    %673 = vmatprep.subr.mxu0 0.0
    %674 = vmatpush1.msra.mxu0 0.0
    %675 = vmatprep.subr.mxu0 0.0
    %676 = vmatpush1.msra.mxu0 0.0
    %677 = vmatprep.subr.mxu0 0.0
    %678 = vmatpush1.msra.mxu0 0.0
    %679 = vmatprep.subr.mxu0 0.0
    %680 = vmatpush1.msra.mxu0 0.0
    %681 = vmatprep.subr.mxu0 0.0
    %682 = vmatpush1.msra.mxu0 0.0
    %683 = vmatprep.subr.mxu0 0.0
    %684 = vmatpush1.msra.mxu0 0.0
    %685 = vmatprep.subr.mxu0 0.0
    %686 = vmatpush1.msra.mxu0 0.0
    %687 = vmatprep.subr.mxu0 0.0
    %688 = vmatpush1.msra.mxu0 0.0
    %689 = vmatprep.subr.mxu0 0.0
    %690 = vmatpush1.msra.mxu0 0.0
    %691 = vmatprep.mubr.f32.mxu0 0.0
    %692 = vmatmul.mubr.f32.gmra.mrb[0].mxu0 %v554
    %v693 = vpop.f32.mrb[0].mxu0
    %v694 = vadd.f32 0.0, %v693
    %v695 = vpop.f32.mrb[0].mxu0
    %v696 = vadd.f32 0.0, %v695
    %697 = vdwg.mxu0
    %v702 = vrot.slane %v623, 7
    %v703 = vrot.slane %v625, 7
    %v704 = vrot.slane %v694, 7
    %v705 = vrot.slane %v696, 7
    %v714 = vadd.f32 %v185, %v702
    %v715 = vadd.f32 %v187, %v703
    %v716 = vadd.f32 %v262, %v704
    %v717 = vadd.f32 %v264, %v705
    %v718 = vadd.f32 %v191, %v623
    %v719 = vadd.f32 %v193, %v625
    %v720 = vadd.f32 %v268, %v694
    %v721 = vadd.f32 %v270, %v696
    %v722 = vxor.u32 %v714, 2147483648
    %v723 = vxor.u32 %v718, 2147483648
    %v724 = vmul.f32 %v722, 1.442695
    %v725 = vpow.pop %v724
    %v726 = vmul.f32 %v723, 1.442695
    %v727 = vpow.pop %v726
    %v728 = vadd.f32 %v725, 1.0
    %v729 = vadd.f32 %v727, 1.0
    %v730 = vrcp.pop %v728
    %v731 = vmul.f32 1.0, %v730
    %v732 = vrcp.pop %v729
    %v733 = vmul.f32 1.0, %v732
    %v734 = vxor.u32 %v715, 2147483648
    %v735 = vxor.u32 %v719, 2147483648
    %v736 = vmul.f32 %v734, 1.442695
    %v737 = vpow.pop %v736
    %v738 = vmul.f32 %v735, 1.442695
    %v739 = vpow.pop %v738
    %v740 = vadd.f32 %v737, 1.0
    %v741 = vadd.f32 %v739, 1.0
    %v742 = vrcp.pop %v740
    %v743 = vmul.f32 1.0, %v742
    %v744 = vrcp.pop %v741
    %v745 = vmul.f32 1.0, %v744
    %v746 = vtanh.pop %v716
    %v747 = vtanh.pop %v720
    %v748 = vxor.u32 %v717, 2147483648
    %v749 = vxor.u32 %v721, 2147483648
    %v750 = vmul.f32 %v748, 1.442695
    %v751 = vpow.pop %v750
    %v752 = vmul.f32 %v749, 1.442695
    %v753 = vpow.pop %v752
    %v754 = vadd.f32 %v751, 1.0
    %v755 = vadd.f32 %v753, 1.0
    %v756 = vrcp.pop %v754
    %v757 = vmul.f32 1.0, %v756
    %v758 = vrcp.pop %v755
    %v759 = vmul.f32 1.0, %v758
    %v762 = vrot.slane %v544, 7
    %v763 = vrot.slane %v545, 7
    %v766 = vmul.f32 %v743, %v762
    %v767 = vmul.f32 %v745, %v763
    %v768 = vmul.f32 %v731, %v746
    %v769 = vmul.f32 %v733, %v747
    %v770 = vadd.f32 %v766, %v768
    %v771 = vadd.f32 %v767, %v769
    %v772 = vtanh.pop %v770
    %v773 = vtanh.pop %v771
    %v774 = vmul.f32 %v757, %v772
    %v775 = vmul.f32 %v759, %v773
    %v778 = vrot.slane %v774, 1
    %v779 = vsel %vm553, %v775, %v778
    %781 = vmatprep.subr.mxu0 %v273
    %782 = vmatpush1.msra.mxu0 %v272
    %783 = vmatprep.subr.mxu0 %v277
    %784 = vmatpush1.msra.mxu0 %v276
    %785 = vmatprep.subr.mxu0 %v281
    %786 = vmatpush1.msra.mxu0 %v280
    %787 = vmatprep.subr.mxu0 %v285
    %788 = vmatpush1.msra.mxu0 %v284
    %789 = vmatprep.subr.mxu0 %v289
    %790 = vmatpush1.msra.mxu0 %v288
    %791 = vmatprep.subr.mxu0 %v293
    %792 = vmatpush1.msra.mxu0 %v292
    %793 = vmatprep.subr.mxu0 %v297
    %794 = vmatpush1.msra.mxu0 %v296
    %795 = vmatprep.subr.mxu0 %v301
    %796 = vmatpush1.msra.mxu0 %v300
    %797 = vmatprep.subr.mxu0 %v305
    %798 = vmatpush1.msra.mxu0 %v304
    %799 = vmatprep.subr.mxu0 %v309
    %800 = vmatpush1.msra.mxu0 %v308
    %801 = vmatprep.subr.mxu0 %v313
    %802 = vmatpush1.msra.mxu0 %v312
    %803 = vmatprep.subr.mxu0 %v317
    %804 = vmatpush1.msra.mxu0 %v316
    %805 = vmatprep.subr.mxu0 %v321
    %806 = vmatpush1.msra.mxu0 %v320
    %807 = vmatprep.subr.mxu0 %v325
    %808 = vmatpush1.msra.mxu0 %v324
    %809 = vmatprep.subr.mxu0 %v329
    %810 = vmatpush1.msra.mxu0 %v328
    %811 = vmatprep.subr.mxu0 %v333
    %812 = vmatpush1.msra.mxu0 %v332
    %813 = vmatprep.subr.mxu0 0.0
    %814 = vmatpush1.msra.mxu0 0.0
    %815 = vmatprep.subr.mxu0 0.0
    %816 = vmatpush1.msra.mxu0 0.0
    %817 = vmatprep.subr.mxu0 0.0
    %818 = vmatpush1.msra.mxu0 0.0
    %819 = vmatprep.subr.mxu0 0.0
    %820 = vmatpush1.msra.mxu0 0.0
    %821 = vmatprep.subr.mxu0 0.0
    %822 = vmatpush1.msra.mxu0 0.0
    %823 = vmatprep.subr.mxu0 0.0
    %824 = vmatpush1.msra.mxu0 0.0
    %825 = vmatprep.subr.mxu0 0.0
    %826 = vmatpush1.msra.mxu0 0.0
    %827 = vmatprep.subr.mxu0 0.0
    %828 = vmatpush1.msra.mxu0 0.0
    %829 = vmatprep.subr.mxu0 0.0
    %830 = vmatpush1.msra.mxu0 0.0
    %831 = vmatprep.subr.mxu0 0.0
    %832 = vmatpush1.msra.mxu0 0.0
    %833 = vmatprep.subr.mxu0 0.0
    %834 = vmatpush1.msra.mxu0 0.0
    %835 = vmatprep.subr.mxu0 0.0
    %836 = vmatpush1.msra.mxu0 0.0
    %837 = vmatprep.subr.mxu0 0.0
    %838 = vmatpush1.msra.mxu0 0.0
    %839 = vmatprep.subr.mxu0 0.0
    %840 = vmatpush1.msra.mxu0 0.0
    %841 = vmatprep.subr.mxu0 0.0
    %842 = vmatpush1.msra.mxu0 0.0
    %843 = vmatprep.subr.mxu0 0.0
    %844 = vmatpush1.msra.mxu0 0.0
    %845 = vmatprep.mubr.f32.mxu0 0.0
    %846 = vmatmul.mubr.f32.gmra.mrb[0].mxu0 %v779
    %v847 = vpop.f32.mrb[0].mxu0
    %v848 = vadd.f32 0.0, %v847
    %v849 = vpop.f32.mrb[0].mxu0
    %v850 = vadd.f32 0.0, %v849
    %851 = vdwg.mxu0
    %852 = vmatprep.subr.mxu0 %v275
    %853 = vmatpush1.msra.mxu0 %v274
    %854 = vmatprep.subr.mxu0 %v279
    %855 = vmatpush1.msra.mxu0 %v278
    %856 = vmatprep.subr.mxu0 %v283
    %857 = vmatpush1.msra.mxu0 %v282
    %858 = vmatprep.subr.mxu0 %v287
    %859 = vmatpush1.msra.mxu0 %v286
    %860 = vmatprep.subr.mxu0 %v291
    %861 = vmatpush1.msra.mxu0 %v290
    %862 = vmatprep.subr.mxu0 %v295
    %863 = vmatpush1.msra.mxu0 %v294
    %864 = vmatprep.subr.mxu0 %v299
    %865 = vmatpush1.msra.mxu0 %v298
    %866 = vmatprep.subr.mxu0 %v303
    %867 = vmatpush1.msra.mxu0 %v302
    %868 = vmatprep.subr.mxu0 %v307
    %869 = vmatpush1.msra.mxu0 %v306
    %870 = vmatprep.subr.mxu0 %v311
    %871 = vmatpush1.msra.mxu0 %v310
    %872 = vmatprep.subr.mxu0 %v315
    %873 = vmatpush1.msra.mxu0 %v314
    %874 = vmatprep.subr.mxu0 %v319
    %875 = vmatpush1.msra.mxu0 %v318
    %876 = vmatprep.subr.mxu0 %v323
    %877 = vmatpush1.msra.mxu0 %v322
    %878 = vmatprep.subr.mxu0 %v327
    %879 = vmatpush1.msra.mxu0 %v326
    %880 = vmatprep.subr.mxu0 %v331
    %881 = vmatpush1.msra.mxu0 %v330
    %882 = vmatprep.subr.mxu0 %v335
    %883 = vmatpush1.msra.mxu0 %v334
    %884 = vmatprep.subr.mxu0 0.0
    %885 = vmatpush1.msra.mxu0 0.0
    %886 = vmatprep.subr.mxu0 0.0
    %887 = vmatpush1.msra.mxu0 0.0
    %888 = vmatprep.subr.mxu0 0.0
    %889 = vmatpush1.msra.mxu0 0.0
    %890 = vmatprep.subr.mxu0 0.0
    %891 = vmatpush1.msra.mxu0 0.0
    %892 = vmatprep.subr.mxu0 0.0
    %893 = vmatpush1.msra.mxu0 0.0
    %894 = vmatprep.subr.mxu0 0.0
    %895 = vmatpush1.msra.mxu0 0.0
    %896 = vmatprep.subr.mxu0 0.0
    %897 = vmatpush1.msra.mxu0 0.0
    %898 = vmatprep.subr.mxu0 0.0
    %899 = vmatpush1.msra.mxu0 0.0
    %900 = vmatprep.subr.mxu0 0.0
    %901 = vmatpush1.msra.mxu0 0.0
    %902 = vmatprep.subr.mxu0 0.0
    %903 = vmatpush1.msra.mxu0 0.0
    %904 = vmatprep.subr.mxu0 0.0
    %905 = vmatpush1.msra.mxu0 0.0
    %906 = vmatprep.subr.mxu0 0.0
    %907 = vmatpush1.msra.mxu0 0.0
    %908 = vmatprep.subr.mxu0 0.0
    %909 = vmatpush1.msra.mxu0 0.0
    %910 = vmatprep.subr.mxu0 0.0
    %911 = vmatpush1.msra.mxu0 0.0
    %912 = vmatprep.subr.mxu0 0.0
    %913 = vmatpush1.msra.mxu0 0.0
    %914 = vmatprep.subr.mxu0 0.0
    %915 = vmatpush1.msra.mxu0 0.0
    %916 = vmatprep.mubr.f32.mxu0 0.0
    %917 = vmatmul.mubr.f32.gmra.mrb[0].mxu0 %v779
    %v918 = vpop.f32.mrb[0].mxu0
    %v919 = vadd.f32 0.0, %v918
    %v920 = vpop.f32.mrb[0].mxu0
    %v921 = vadd.f32 0.0, %v920
    %922 = vdwg.mxu0
    %v927 = vrot.slane %v848, 6
    %v928 = vrot.slane %v850, 6
    %v929 = vrot.slane %v919, 6
    %v930 = vrot.slane %v921, 6
    %v931 = vrot.slane %v848, 7
    %v932 = vrot.slane %v850, 7
    %v933 = vrot.slane %v919, 7
    %v934 = vrot.slane %v921, 7
    %v943 = vadd.f32 %v185, %v927
    %v944 = vadd.f32 %v187, %v928
    %v945 = vadd.f32 %v262, %v929
    %v946 = vadd.f32 %v264, %v930
    %v947 = vadd.f32 %v191, %v931
    %v948 = vadd.f32 %v193, %v932
    %v949 = vadd.f32 %v268, %v933
    %v950 = vadd.f32 %v270, %v934
    %v951 = vxor.u32 %v943, 2147483648
    %v952 = vxor.u32 %v947, 2147483648
    %v953 = vmul.f32 %v951, 1.442695
    %v954 = vpow.pop %v953
    %v955 = vmul.f32 %v952, 1.442695
    %v956 = vpow.pop %v955
    %v957 = vadd.f32 %v954, 1.0
    %v958 = vadd.f32 %v956, 1.0
    %v959 = vrcp.pop %v957
    %v960 = vmul.f32 1.0, %v959
    %v961 = vrcp.pop %v958
    %v962 = vmul.f32 1.0, %v961
    %v963 = vxor.u32 %v944, 2147483648
    %v964 = vxor.u32 %v948, 2147483648
    %v965 = vmul.f32 %v963, 1.442695
    %v966 = vpow.pop %v965
    %v967 = vmul.f32 %v964, 1.442695
    %v968 = vpow.pop %v967
    %v969 = vadd.f32 %v966, 1.0
    %v970 = vadd.f32 %v968, 1.0
    %v971 = vrcp.pop %v969
    %v972 = vmul.f32 1.0, %v971
    %v973 = vrcp.pop %v970
    %v974 = vmul.f32 1.0, %v973
    %v975 = vtanh.pop %v945
    %v976 = vtanh.pop %v949
    %v977 = vxor.u32 %v946, 2147483648
    %v978 = vxor.u32 %v950, 2147483648
    %v979 = vmul.f32 %v977, 1.442695
    %v980 = vpow.pop %v979
    %v981 = vmul.f32 %v978, 1.442695
    %v982 = vpow.pop %v981
    %v983 = vadd.f32 %v980, 1.0
    %v984 = vadd.f32 %v982, 1.0
    %v985 = vrcp.pop %v983
    %v986 = vmul.f32 1.0, %v985
    %v987 = vrcp.pop %v984
    %v988 = vmul.f32 1.0, %v987
    %v991 = vrot.slane %v770, 7
    %v992 = vrot.slane %v771, 7
    %v995 = vmul.f32 %v972, %v991
    %v996 = vmul.f32 %v974, %v992
    %v997 = vmul.f32 %v960, %v975
    %v998 = vmul.f32 %v962, %v976
    %v999 = vadd.f32 %v995, %v997
    %v1000 = vadd.f32 %v996, %v998
    %v1001 = vtanh.pop %v999
    %v1002 = vtanh.pop %v1000
    %v1003 = vmul.f32 %v986, %v1001
    %v1004 = vmul.f32 %v988, %v1002
    %v1007 = vrot.slane %v1003, 2
    %v1008 = vrot.slane %v1004, 1
    %v1009 = vsel %vm553, %v1008, %v1007
    %1011 = vmatprep.subr.mxu0 %v273
    %1012 = vmatpush1.msra.mxu0 %v272
    %1013 = vmatprep.subr.mxu0 %v277
    %1014 = vmatpush1.msra.mxu0 %v276
    %1015 = vmatprep.subr.mxu0 %v281
    %1016 = vmatpush1.msra.mxu0 %v280
    %1017 = vmatprep.subr.mxu0 %v285
    %1018 = vmatpush1.msra.mxu0 %v284
    %1019 = vmatprep.subr.mxu0 %v289
    %1020 = vmatpush1.msra.mxu0 %v288
    %1021 = vmatprep.subr.mxu0 %v293
    %1022 = vmatpush1.msra.mxu0 %v292
    %1023 = vmatprep.subr.mxu0 %v297
    %1024 = vmatpush1.msra.mxu0 %v296
    %1025 = vmatprep.subr.mxu0 %v301
    %1026 = vmatpush1.msra.mxu0 %v300
    %1027 = vmatprep.subr.mxu0 %v305
    %1028 = vmatpush1.msra.mxu0 %v304
    %1029 = vmatprep.subr.mxu0 %v309
    %1030 = vmatpush1.msra.mxu0 %v308
    %1031 = vmatprep.subr.mxu0 %v313
    %1032 = vmatpush1.msra.mxu0 %v312
    %1033 = vmatprep.subr.mxu0 %v317
    %1034 = vmatpush1.msra.mxu0 %v316
    %1035 = vmatprep.subr.mxu0 %v321
    %1036 = vmatpush1.msra.mxu0 %v320
    %1037 = vmatprep.subr.mxu0 %v325
    %1038 = vmatpush1.msra.mxu0 %v324
    %1039 = vmatprep.subr.mxu0 %v329
    %1040 = vmatpush1.msra.mxu0 %v328
    %1041 = vmatprep.subr.mxu0 %v333
    %1042 = vmatpush1.msra.mxu0 %v332
    %1043 = vmatprep.subr.mxu0 0.0
    %1044 = vmatpush1.msra.mxu0 0.0
    %1045 = vmatprep.subr.mxu0 0.0
    %1046 = vmatpush1.msra.mxu0 0.0
    %1047 = vmatprep.subr.mxu0 0.0
    %1048 = vmatpush1.msra.mxu0 0.0
    %1049 = vmatprep.subr.mxu0 0.0
    %1050 = vmatpush1.msra.mxu0 0.0
    %1051 = vmatprep.subr.mxu0 0.0
    %1052 = vmatpush1.msra.mxu0 0.0
    %1053 = vmatprep.subr.mxu0 0.0
    %1054 = vmatpush1.msra.mxu0 0.0
    %1055 = vmatprep.subr.mxu0 0.0
    %1056 = vmatpush1.msra.mxu0 0.0
    %1057 = vmatprep.subr.mxu0 0.0
    %1058 = vmatpush1.msra.mxu0 0.0
    %1059 = vmatprep.subr.mxu0 0.0
    %1060 = vmatpush1.msra.mxu0 0.0
    %1061 = vmatprep.subr.mxu0 0.0
    %1062 = vmatpush1.msra.mxu0 0.0
    %1063 = vmatprep.subr.mxu0 0.0
    %1064 = vmatpush1.msra.mxu0 0.0
    %1065 = vmatprep.subr.mxu0 0.0
    %1066 = vmatpush1.msra.mxu0 0.0
    %1067 = vmatprep.subr.mxu0 0.0
    %1068 = vmatpush1.msra.mxu0 0.0
    %1069 = vmatprep.subr.mxu0 0.0
    %1070 = vmatpush1.msra.mxu0 0.0
    %1071 = vmatprep.subr.mxu0 0.0
    %1072 = vmatpush1.msra.mxu0 0.0
    %1073 = vmatprep.subr.mxu0 0.0
    %1074 = vmatpush1.msra.mxu0 0.0
    %1075 = vmatprep.mubr.f32.mxu0 0.0
    %1076 = vmatmul.mubr.f32.gmra.mrb[0].mxu0 %v1009
    %v1077 = vpop.f32.mrb[0].mxu0
    %v1078 = vadd.f32 0.0, %v1077
    %v1079 = vpop.f32.mrb[0].mxu0
    %v1080 = vadd.f32 0.0, %v1079
    %1081 = vdwg.mxu0
    %1082 = vmatprep.subr.mxu0 %v275
    %1083 = vmatpush1.msra.mxu0 %v274
    %1084 = vmatprep.subr.mxu0 %v279
    %1085 = vmatpush1.msra.mxu0 %v278
    %1086 = vmatprep.subr.mxu0 %v283
    %1087 = vmatpush1.msra.mxu0 %v282
    %1088 = vmatprep.subr.mxu0 %v287
    %1089 = vmatpush1.msra.mxu0 %v286
    %1090 = vmatprep.subr.mxu0 %v291
    %1091 = vmatpush1.msra.mxu0 %v290
    %1092 = vmatprep.subr.mxu0 %v295
    %1093 = vmatpush1.msra.mxu0 %v294
    %1094 = vmatprep.subr.mxu0 %v299
    %1095 = vmatpush1.msra.mxu0 %v298
    %1096 = vmatprep.subr.mxu0 %v303
    %1097 = vmatpush1.msra.mxu0 %v302
    %1098 = vmatprep.subr.mxu0 %v307
    %1099 = vmatpush1.msra.mxu0 %v306
    %1100 = vmatprep.subr.mxu0 %v311
    %1101 = vmatpush1.msra.mxu0 %v310
    %1102 = vmatprep.subr.mxu0 %v315
    %1103 = vmatpush1.msra.mxu0 %v314
    %1104 = vmatprep.subr.mxu0 %v319
    %1105 = vmatpush1.msra.mxu0 %v318
    %1106 = vmatprep.subr.mxu0 %v323
    %1107 = vmatpush1.msra.mxu0 %v322
    %1108 = vmatprep.subr.mxu0 %v327
    %1109 = vmatpush1.msra.mxu0 %v326
    %1110 = vmatprep.subr.mxu0 %v331
    %1111 = vmatpush1.msra.mxu0 %v330
    %1112 = vmatprep.subr.mxu0 %v335
    %1113 = vmatpush1.msra.mxu0 %v334
    %1114 = vmatprep.subr.mxu0 0.0
    %1115 = vmatpush1.msra.mxu0 0.0
    %1116 = vmatprep.subr.mxu0 0.0
    %1117 = vmatpush1.msra.mxu0 0.0
    %1118 = vmatprep.subr.mxu0 0.0
    %1119 = vmatpush1.msra.mxu0 0.0
    %1120 = vmatprep.subr.mxu0 0.0
    %1121 = vmatpush1.msra.mxu0 0.0
    %1122 = vmatprep.subr.mxu0 0.0
    %1123 = vmatpush1.msra.mxu0 0.0
    %1124 = vmatprep.subr.mxu0 0.0
    %1125 = vmatpush1.msra.mxu0 0.0
    %1126 = vmatprep.subr.mxu0 0.0
    %1127 = vmatpush1.msra.mxu0 0.0
    %1128 = vmatprep.subr.mxu0 0.0
    %1129 = vmatpush1.msra.mxu0 0.0
    %1130 = vmatprep.subr.mxu0 0.0
    %1131 = vmatpush1.msra.mxu0 0.0
    %1132 = vmatprep.subr.mxu0 0.0
    %1133 = vmatpush1.msra.mxu0 0.0
    %1134 = vmatprep.subr.mxu0 0.0
    %1135 = vmatpush1.msra.mxu0 0.0
    %1136 = vmatprep.subr.mxu0 0.0
    %1137 = vmatpush1.msra.mxu0 0.0
    %1138 = vmatprep.subr.mxu0 0.0
    %1139 = vmatpush1.msra.mxu0 0.0
    %1140 = vmatprep.subr.mxu0 0.0
    %1141 = vmatpush1.msra.mxu0 0.0
    %1142 = vmatprep.subr.mxu0 0.0
    %1143 = vmatpush1.msra.mxu0 0.0
    %1144 = vmatprep.subr.mxu0 0.0
    %1145 = vmatpush1.msra.mxu0 0.0
    %1146 = vmatprep.mubr.f32.mxu0 0.0
    %1147 = vmatmul.mubr.f32.gmra.mrb[0].mxu0 %v1009
    %v1148 = vpop.f32.mrb[0].mxu0
    %v1149 = vadd.f32 0.0, %v1148
    %v1150 = vpop.f32.mrb[0].mxu0
    %v1151 = vadd.f32 0.0, %v1150
    %1152 = vdwg.mxu0
    %v1157 = vrot.slane %v1078, 5
    %v1158 = vrot.slane %v1080, 5
    %v1159 = vrot.slane %v1149, 5
    %v1160 = vrot.slane %v1151, 5
    %v1161 = vrot.slane %v1078, 6
    %v1162 = vrot.slane %v1080, 6
    %v1163 = vrot.slane %v1149, 6
    %v1164 = vrot.slane %v1151, 6
    %v1173 = vadd.f32 %v185, %v1157
    %v1174 = vadd.f32 %v187, %v1158
    %v1175 = vadd.f32 %v262, %v1159
    %v1176 = vadd.f32 %v264, %v1160
    %v1177 = vadd.f32 %v191, %v1161
    %v1178 = vadd.f32 %v193, %v1162
    %v1179 = vadd.f32 %v268, %v1163
    %v1180 = vadd.f32 %v270, %v1164
    %v1181 = vxor.u32 %v1173, 2147483648
    %v1182 = vxor.u32 %v1177, 2147483648
    %v1183 = vmul.f32 %v1181, 1.442695
    %v1184 = vpow.pop %v1183
    %v1185 = vmul.f32 %v1182, 1.442695
    %v1186 = vpow.pop %v1185
    %v1187 = vadd.f32 %v1184, 1.0
    %v1188 = vadd.f32 %v1186, 1.0
    %v1189 = vrcp.pop %v1187
    %v1190 = vmul.f32 1.0, %v1189
    %v1191 = vrcp.pop %v1188
    %v1192 = vmul.f32 1.0, %v1191
    %v1193 = vxor.u32 %v1174, 2147483648
    %v1194 = vxor.u32 %v1178, 2147483648
    %v1195 = vmul.f32 %v1193, 1.442695
    %v1196 = vpow.pop %v1195
    %v1197 = vmul.f32 %v1194, 1.442695
    %v1198 = vpow.pop %v1197
    %v1199 = vadd.f32 %v1196, 1.0
    %v1200 = vadd.f32 %v1198, 1.0
    %v1201 = vrcp.pop %v1199
    %v1202 = vmul.f32 1.0, %v1201
    %v1203 = vrcp.pop %v1200
    %v1204 = vmul.f32 1.0, %v1203
    %v1205 = vtanh.pop %v1175
    %v1206 = vtanh.pop %v1179
    %v1207 = vxor.u32 %v1176, 2147483648
    %v1208 = vxor.u32 %v1180, 2147483648
    %v1209 = vmul.f32 %v1207, 1.442695
    %v1210 = vpow.pop %v1209
    %v1211 = vmul.f32 %v1208, 1.442695
    %v1212 = vpow.pop %v1211
    %v1213 = vadd.f32 %v1210, 1.0
    %v1214 = vadd.f32 %v1212, 1.0
    %v1215 = vrcp.pop %v1213
    %v1216 = vmul.f32 1.0, %v1215
    %v1217 = vrcp.pop %v1214
    %v1218 = vmul.f32 1.0, %v1217
    %v1221 = vrot.slane %v999, 7
    %v1222 = vrot.slane %v1000, 7
    %v1225 = vmul.f32 %v1202, %v1221
    %v1226 = vmul.f32 %v1204, %v1222
    %v1227 = vmul.f32 %v1190, %v1205
    %v1228 = vmul.f32 %v1192, %v1206
    %v1229 = vadd.f32 %v1225, %v1227
    %v1230 = vadd.f32 %v1226, %v1228
    %v1231 = vtanh.pop %v1229
    %v1232 = vtanh.pop %v1230
    %v1233 = vmul.f32 %v1216, %v1231
    %v1234 = vmul.f32 %v1218, %v1232
    %v1237 = vrot.slane %v1233, 3
    %v1238 = vrot.slane %v1234, 2
    %v1239 = vsel %vm553, %v1238, %v1237
    %1241 = vmatprep.subr.mxu0 %v273
    %1242 = vmatpush1.msra.mxu0 %v272
    %1243 = vmatprep.subr.mxu0 %v277
    %1244 = vmatpush1.msra.mxu0 %v276
    %1245 = vmatprep.subr.mxu0 %v281
    %1246 = vmatpush1.msra.mxu0 %v280
    %1247 = vmatprep.subr.mxu0 %v285
    %1248 = vmatpush1.msra.mxu0 %v284
    %1249 = vmatprep.subr.mxu0 %v289
    %1250 = vmatpush1.msra.mxu0 %v288
    %1251 = vmatprep.subr.mxu0 %v293
    %1252 = vmatpush1.msra.mxu0 %v292
    %1253 = vmatprep.subr.mxu0 %v297
    %1254 = vmatpush1.msra.mxu0 %v296
    %1255 = vmatprep.subr.mxu0 %v301
    %1256 = vmatpush1.msra.mxu0 %v300
    %1257 = vmatprep.subr.mxu0 %v305
    %1258 = vmatpush1.msra.mxu0 %v304
    %1259 = vmatprep.subr.mxu0 %v309
    %1260 = vmatpush1.msra.mxu0 %v308
    %1261 = vmatprep.subr.mxu0 %v313
    %1262 = vmatpush1.msra.mxu0 %v312
    %1263 = vmatprep.subr.mxu0 %v317
    %1264 = vmatpush1.msra.mxu0 %v316
    %1265 = vmatprep.subr.mxu0 %v321
    %1266 = vmatpush1.msra.mxu0 %v320
    %1267 = vmatprep.subr.mxu0 %v325
    %1268 = vmatpush1.msra.mxu0 %v324
    %1269 = vmatprep.subr.mxu0 %v329
    %1270 = vmatpush1.msra.mxu0 %v328
    %1271 = vmatprep.subr.mxu0 %v333
    %1272 = vmatpush1.msra.mxu0 %v332
    %1273 = vmatprep.subr.mxu0 0.0
    %1274 = vmatpush1.msra.mxu0 0.0
    %1275 = vmatprep.subr.mxu0 0.0
    %1276 = vmatpush1.msra.mxu0 0.0
    %1277 = vmatprep.subr.mxu0 0.0
    %1278 = vmatpush1.msra.mxu0 0.0
    %1279 = vmatprep.subr.mxu0 0.0
    %1280 = vmatpush1.msra.mxu0 0.0
    %1281 = vmatprep.subr.mxu0 0.0
    %1282 = vmatpush1.msra.mxu0 0.0
    %1283 = vmatprep.subr.mxu0 0.0
    %1284 = vmatpush1.msra.mxu0 0.0
    %1285 = vmatprep.subr.mxu0 0.0
    %1286 = vmatpush1.msra.mxu0 0.0
    %1287 = vmatprep.subr.mxu0 0.0
    %1288 = vmatpush1.msra.mxu0 0.0
    %1289 = vmatprep.subr.mxu0 0.0
    %1290 = vmatpush1.msra.mxu0 0.0
    %1291 = vmatprep.subr.mxu0 0.0
    %1292 = vmatpush1.msra.mxu0 0.0
    %1293 = vmatprep.subr.mxu0 0.0
    %1294 = vmatpush1.msra.mxu0 0.0
    %1295 = vmatprep.subr.mxu0 0.0
    %1296 = vmatpush1.msra.mxu0 0.0
    %1297 = vmatprep.subr.mxu0 0.0
    %1298 = vmatpush1.msra.mxu0 0.0
    %1299 = vmatprep.subr.mxu0 0.0
    %1300 = vmatpush1.msra.mxu0 0.0
    %1301 = vmatprep.subr.mxu0 0.0
    %1302 = vmatpush1.msra.mxu0 0.0
    %1303 = vmatprep.subr.mxu0 0.0
    %1304 = vmatpush1.msra.mxu0 0.0
    %1305 = vmatprep.mubr.f32.mxu0 0.0
    %1306 = vmatmul.mubr.f32.gmra.mrb[0].mxu0 %v1239
    %v1307 = vpop.f32.mrb[0].mxu0
    %v1308 = vadd.f32 0.0, %v1307
    %v1309 = vpop.f32.mrb[0].mxu0
    %v1310 = vadd.f32 0.0, %v1309
    %1311 = vdwg.mxu0
    %1312 = vmatprep.subr.mxu0 %v275
    %1313 = vmatpush1.msra.mxu0 %v274
    %1314 = vmatprep.subr.mxu0 %v279
    %1315 = vmatpush1.msra.mxu0 %v278
    %1316 = vmatprep.subr.mxu0 %v283
    %1317 = vmatpush1.msra.mxu0 %v282
    %1318 = vmatprep.subr.mxu0 %v287
    %1319 = vmatpush1.msra.mxu0 %v286
    %1320 = vmatprep.subr.mxu0 %v291
    %1321 = vmatpush1.msra.mxu0 %v290
    %1322 = vmatprep.subr.mxu0 %v295
    %1323 = vmatpush1.msra.mxu0 %v294
    %1324 = vmatprep.subr.mxu0 %v299
    %1325 = vmatpush1.msra.mxu0 %v298
    %1326 = vmatprep.subr.mxu0 %v303
    %1327 = vmatpush1.msra.mxu0 %v302
    %1328 = vmatprep.subr.mxu0 %v307
    %1329 = vmatpush1.msra.mxu0 %v306
    %1330 = vmatprep.subr.mxu0 %v311
    %1331 = vmatpush1.msra.mxu0 %v310
    %1332 = vmatprep.subr.mxu0 %v315
    %1333 = vmatpush1.msra.mxu0 %v314
    %1334 = vmatprep.subr.mxu0 %v319
    %1335 = vmatpush1.msra.mxu0 %v318
    %1336 = vmatprep.subr.mxu0 %v323
    %1337 = vmatpush1.msra.mxu0 %v322
    %1338 = vmatprep.subr.mxu0 %v327
    %1339 = vmatpush1.msra.mxu0 %v326
    %1340 = vmatprep.subr.mxu0 %v331
    %1341 = vmatpush1.msra.mxu0 %v330
    %1342 = vmatprep.subr.mxu0 %v335
    %1343 = vmatpush1.msra.mxu0 %v334
    %1344 = vmatprep.subr.mxu0 0.0
    %1345 = vmatpush1.msra.mxu0 0.0
    %1346 = vmatprep.subr.mxu0 0.0
    %1347 = vmatpush1.msra.mxu0 0.0
    %1348 = vmatprep.subr.mxu0 0.0
    %1349 = vmatpush1.msra.mxu0 0.0
    %1350 = vmatprep.subr.mxu0 0.0
    %1351 = vmatpush1.msra.mxu0 0.0
    %1352 = vmatprep.subr.mxu0 0.0
    %1353 = vmatpush1.msra.mxu0 0.0
    %1354 = vmatprep.subr.mxu0 0.0
    %1355 = vmatpush1.msra.mxu0 0.0
    %1356 = vmatprep.subr.mxu0 0.0
    %1357 = vmatpush1.msra.mxu0 0.0
    %1358 = vmatprep.subr.mxu0 0.0
    %1359 = vmatpush1.msra.mxu0 0.0
    %1360 = vmatprep.subr.mxu0 0.0
    %1361 = vmatpush1.msra.mxu0 0.0
    %1362 = vmatprep.subr.mxu0 0.0
    %1363 = vmatpush1.msra.mxu0 0.0
    %1364 = vmatprep.subr.mxu0 0.0
    %1365 = vmatpush1.msra.mxu0 0.0
    %1366 = vmatprep.subr.mxu0 0.0
    %1367 = vmatpush1.msra.mxu0 0.0
    %1368 = vmatprep.subr.mxu0 0.0
    %1369 = vmatpush1.msra.mxu0 0.0
    %1370 = vmatprep.subr.mxu0 0.0
    %1371 = vmatpush1.msra.mxu0 0.0
    %1372 = vmatprep.subr.mxu0 0.0
    %1373 = vmatpush1.msra.mxu0 0.0
    %1374 = vmatprep.subr.mxu0 0.0
    %1375 = vmatpush1.msra.mxu0 0.0
    %1376 = vmatprep.mubr.f32.mxu0 0.0
    %1377 = vmatmul.mubr.f32.gmra.mrb[0].mxu0 %v1239
    %v1378 = vpop.f32.mrb[0].mxu0
    %v1379 = vadd.f32 0.0, %v1378
    %v1380 = vpop.f32.mrb[0].mxu0
    %v1381 = vadd.f32 0.0, %v1380
    %1382 = vdwg.mxu0
    %v1387 = vrot.slane %v1308, 4
    %v1388 = vrot.slane %v1310, 4
    %v1389 = vrot.slane %v1379, 4
    %v1390 = vrot.slane %v1381, 4
    %v1391 = vrot.slane %v1308, 5
    %v1392 = vrot.slane %v1310, 5
    %v1393 = vrot.slane %v1379, 5
    %v1394 = vrot.slane %v1381, 5
    %v1403 = vadd.f32 %v185, %v1387
    %v1404 = vadd.f32 %v187, %v1388
    %v1405 = vadd.f32 %v262, %v1389
    %v1406 = vadd.f32 %v264, %v1390
    %v1407 = vadd.f32 %v191, %v1391
    %v1408 = vadd.f32 %v193, %v1392
    %v1409 = vadd.f32 %v268, %v1393
    %v1410 = vadd.f32 %v270, %v1394
    %v1411 = vxor.u32 %v1403, 2147483648
    %v1412 = vxor.u32 %v1407, 2147483648
    %v1413 = vmul.f32 %v1411, 1.442695
    %v1414 = vpow.pop %v1413
    %v1415 = vmul.f32 %v1412, 1.442695
    %v1416 = vpow.pop %v1415
    %v1417 = vadd.f32 %v1414, 1.0
    %v1418 = vadd.f32 %v1416, 1.0
    %v1419 = vrcp.pop %v1417
    %v1420 = vmul.f32 1.0, %v1419
    %v1421 = vrcp.pop %v1418
    %v1422 = vmul.f32 1.0, %v1421
    %v1423 = vxor.u32 %v1404, 2147483648
    %v1424 = vxor.u32 %v1408, 2147483648
    %v1425 = vmul.f32 %v1423, 1.442695
    %v1426 = vpow.pop %v1425
    %v1427 = vmul.f32 %v1424, 1.442695
    %v1428 = vpow.pop %v1427
    %v1429 = vadd.f32 %v1426, 1.0
    %v1430 = vadd.f32 %v1428, 1.0
    %v1431 = vrcp.pop %v1429
    %v1432 = vmul.f32 1.0, %v1431
    %v1433 = vrcp.pop %v1430
    %v1434 = vmul.f32 1.0, %v1433
    %v1435 = vtanh.pop %v1405
    %v1436 = vtanh.pop %v1409
    %v1437 = vxor.u32 %v1406, 2147483648
    %v1438 = vxor.u32 %v1410, 2147483648
    %v1439 = vmul.f32 %v1437, 1.442695
    %v1440 = vpow.pop %v1439
    %v1441 = vmul.f32 %v1438, 1.442695
    %v1442 = vpow.pop %v1441
    %v1443 = vadd.f32 %v1440, 1.0
    %v1444 = vadd.f32 %v1442, 1.0
    %v1445 = vrcp.pop %v1443
    %v1446 = vmul.f32 1.0, %v1445
    %v1447 = vrcp.pop %v1444
    %v1448 = vmul.f32 1.0, %v1447
    %v1451 = vrot.slane %v1229, 7
    %v1452 = vrot.slane %v1230, 7
    %v1455 = vmul.f32 %v1432, %v1451
    %v1456 = vmul.f32 %v1434, %v1452
    %v1457 = vmul.f32 %v1420, %v1435
    %v1458 = vmul.f32 %v1422, %v1436
    %v1459 = vadd.f32 %v1455, %v1457
    %v1460 = vadd.f32 %v1456, %v1458
    %v1461 = vtanh.pop %v1459
    %v1462 = vtanh.pop %v1460
    %v1463 = vmul.f32 %v1446, %v1461
    %v1464 = vmul.f32 %v1448, %v1462
    %v1467 = vrot.slane %v1463, 4
    %v1468 = vrot.slane %v1464, 3
    %v1469 = vsel %vm553, %v1468, %v1467
    %1471 = vmatprep.subr.mxu0 %v273
    %1472 = vmatpush1.msra.mxu0 %v272
    %1473 = vmatprep.subr.mxu0 %v277
    %1474 = vmatpush1.msra.mxu0 %v276
    %1475 = vmatprep.subr.mxu0 %v281
    %1476 = vmatpush1.msra.mxu0 %v280
    %1477 = vmatprep.subr.mxu0 %v285
    %1478 = vmatpush1.msra.mxu0 %v284
    %1479 = vmatprep.subr.mxu0 %v289
    %1480 = vmatpush1.msra.mxu0 %v288
    %1481 = vmatprep.subr.mxu0 %v293
    %1482 = vmatpush1.msra.mxu0 %v292
    %1483 = vmatprep.subr.mxu0 %v297
    %1484 = vmatpush1.msra.mxu0 %v296
    %1485 = vmatprep.subr.mxu0 %v301
    %1486 = vmatpush1.msra.mxu0 %v300
    %1487 = vmatprep.subr.mxu0 %v305
    %1488 = vmatpush1.msra.mxu0 %v304
    %1489 = vmatprep.subr.mxu0 %v309
    %1490 = vmatpush1.msra.mxu0 %v308
    %1491 = vmatprep.subr.mxu0 %v313
    %1492 = vmatpush1.msra.mxu0 %v312
    %1493 = vmatprep.subr.mxu0 %v317
    %1494 = vmatpush1.msra.mxu0 %v316
    %1495 = vmatprep.subr.mxu0 %v321
    %1496 = vmatpush1.msra.mxu0 %v320
    %1497 = vmatprep.subr.mxu0 %v325
    %1498 = vmatpush1.msra.mxu0 %v324
    %1499 = vmatprep.subr.mxu0 %v329
    %1500 = vmatpush1.msra.mxu0 %v328
    %1501 = vmatprep.subr.mxu0 %v333
    %1502 = vmatpush1.msra.mxu0 %v332
    %1503 = vmatprep.subr.mxu0 0.0
    %1504 = vmatpush1.msra.mxu0 0.0
    %1505 = vmatprep.subr.mxu0 0.0
    %1506 = vmatpush1.msra.mxu0 0.0
    %1507 = vmatprep.subr.mxu0 0.0
    %1508 = vmatpush1.msra.mxu0 0.0
    %1509 = vmatprep.subr.mxu0 0.0
    %1510 = vmatpush1.msra.mxu0 0.0
    %1511 = vmatprep.subr.mxu0 0.0
    %1512 = vmatpush1.msra.mxu0 0.0
    %1513 = vmatprep.subr.mxu0 0.0
    %1514 = vmatpush1.msra.mxu0 0.0
    %1515 = vmatprep.subr.mxu0 0.0
    %1516 = vmatpush1.msra.mxu0 0.0
    %1517 = vmatprep.subr.mxu0 0.0
    %1518 = vmatpush1.msra.mxu0 0.0
    %1519 = vmatprep.subr.mxu0 0.0
    %1520 = vmatpush1.msra.mxu0 0.0
    %1521 = vmatprep.subr.mxu0 0.0
    %1522 = vmatpush1.msra.mxu0 0.0
    %1523 = vmatprep.subr.mxu0 0.0
    %1524 = vmatpush1.msra.mxu0 0.0
    %1525 = vmatprep.subr.mxu0 0.0
    %1526 = vmatpush1.msra.mxu0 0.0
    %1527 = vmatprep.subr.mxu0 0.0
    %1528 = vmatpush1.msra.mxu0 0.0
    %1529 = vmatprep.subr.mxu0 0.0
    %1530 = vmatpush1.msra.mxu0 0.0
    %1531 = vmatprep.subr.mxu0 0.0
    %1532 = vmatpush1.msra.mxu0 0.0
    %1533 = vmatprep.subr.mxu0 0.0
    %1534 = vmatpush1.msra.mxu0 0.0
    %1535 = vmatprep.mubr.f32.mxu0 0.0
    %1536 = vmatmul.mubr.f32.gmra.mrb[0].mxu0 %v1469
    %v1537 = vpop.f32.mrb[0].mxu0
    %v1538 = vadd.f32 0.0, %v1537
    %v1539 = vpop.f32.mrb[0].mxu0
    %v1540 = vadd.f32 0.0, %v1539
    %1541 = vdwg.mxu0
    %1542 = vmatprep.subr.mxu0 %v275
    %1543 = vmatpush1.msra.mxu0 %v274
    %1544 = vmatprep.subr.mxu0 %v279
    %1545 = vmatpush1.msra.mxu0 %v278
    %1546 = vmatprep.subr.mxu0 %v283
    %1547 = vmatpush1.msra.mxu0 %v282
    %1548 = vmatprep.subr.mxu0 %v287
    %1549 = vmatpush1.msra.mxu0 %v286
    %1550 = vmatprep.subr.mxu0 %v291
    %1551 = vmatpush1.msra.mxu0 %v290
    %1552 = vmatprep.subr.mxu0 %v295
    %1553 = vmatpush1.msra.mxu0 %v294
    %1554 = vmatprep.subr.mxu0 %v299
    %1555 = vmatpush1.msra.mxu0 %v298
    %1556 = vmatprep.subr.mxu0 %v303
    %1557 = vmatpush1.msra.mxu0 %v302
    %1558 = vmatprep.subr.mxu0 %v307
    %1559 = vmatpush1.msra.mxu0 %v306
    %1560 = vmatprep.subr.mxu0 %v311
    %1561 = vmatpush1.msra.mxu0 %v310
    %1562 = vmatprep.subr.mxu0 %v315
    %1563 = vmatpush1.msra.mxu0 %v314
    %1564 = vmatprep.subr.mxu0 %v319
    %1565 = vmatpush1.msra.mxu0 %v318
    %1566 = vmatprep.subr.mxu0 %v323
    %1567 = vmatpush1.msra.mxu0 %v322
    %1568 = vmatprep.subr.mxu0 %v327
    %1569 = vmatpush1.msra.mxu0 %v326
    %1570 = vmatprep.subr.mxu0 %v331
    %1571 = vmatpush1.msra.mxu0 %v330
    %1572 = vmatprep.subr.mxu0 %v335
    %1573 = vmatpush1.msra.mxu0 %v334
    %1574 = vmatprep.subr.mxu0 0.0
    %1575 = vmatpush1.msra.mxu0 0.0
    %1576 = vmatprep.subr.mxu0 0.0
    %1577 = vmatpush1.msra.mxu0 0.0
    %1578 = vmatprep.subr.mxu0 0.0
    %1579 = vmatpush1.msra.mxu0 0.0
    %1580 = vmatprep.subr.mxu0 0.0
    %1581 = vmatpush1.msra.mxu0 0.0
    %1582 = vmatprep.subr.mxu0 0.0
    %1583 = vmatpush1.msra.mxu0 0.0
    %1584 = vmatprep.subr.mxu0 0.0
    %1585 = vmatpush1.msra.mxu0 0.0
    %1586 = vmatprep.subr.mxu0 0.0
    %1587 = vmatpush1.msra.mxu0 0.0
    %1588 = vmatprep.subr.mxu0 0.0
    %1589 = vmatpush1.msra.mxu0 0.0
    %1590 = vmatprep.subr.mxu0 0.0
    %1591 = vmatpush1.msra.mxu0 0.0
    %1592 = vmatprep.subr.mxu0 0.0
    %1593 = vmatpush1.msra.mxu0 0.0
    %1594 = vmatprep.subr.mxu0 0.0
    %1595 = vmatpush1.msra.mxu0 0.0
    %1596 = vmatprep.subr.mxu0 0.0
    %1597 = vmatpush1.msra.mxu0 0.0
    %1598 = vmatprep.subr.mxu0 0.0
    %1599 = vmatpush1.msra.mxu0 0.0
    %1600 = vmatprep.subr.mxu0 0.0
    %1601 = vmatpush1.msra.mxu0 0.0
    %1602 = vmatprep.subr.mxu0 0.0
    %1603 = vmatpush1.msra.mxu0 0.0
    %1604 = vmatprep.subr.mxu0 0.0
    %1605 = vmatpush1.msra.mxu0 0.0
    %1606 = vmatprep.mubr.f32.mxu0 0.0
    %1607 = vmatmul.mubr.f32.gmra.mrb[0].mxu0 %v1469
    %v1608 = vpop.f32.mrb[0].mxu0
    %v1609 = vadd.f32 0.0, %v1608
    %v1610 = vpop.f32.mrb[0].mxu0
    %v1611 = vadd.f32 0.0, %v1610
    %1612 = vdwg.mxu0
    %v1617 = vrot.slane %v1538, 3
    %v1618 = vrot.slane %v1540, 3
    %v1619 = vrot.slane %v1609, 3
    %v1620 = vrot.slane %v1611, 3
    %v1621 = vrot.slane %v1538, 4
    %v1622 = vrot.slane %v1540, 4
    %v1623 = vrot.slane %v1609, 4
    %v1624 = vrot.slane %v1611, 4
    %v1633 = vadd.f32 %v185, %v1617
    %v1634 = vadd.f32 %v187, %v1618
    %v1635 = vadd.f32 %v262, %v1619
    %v1636 = vadd.f32 %v264, %v1620
    %v1637 = vadd.f32 %v191, %v1621
    %v1638 = vadd.f32 %v193, %v1622
    %v1639 = vadd.f32 %v268, %v1623
    %v1640 = vadd.f32 %v270, %v1624
    %v1641 = vxor.u32 %v1633, 2147483648
    %v1642 = vxor.u32 %v1637, 2147483648
    %v1643 = vmul.f32 %v1641, 1.442695
    %v1644 = vpow.pop %v1643
    %v1645 = vmul.f32 %v1642, 1.442695
    %v1646 = vpow.pop %v1645
    %v1647 = vadd.f32 %v1644, 1.0
    %v1648 = vadd.f32 %v1646, 1.0
    %v1649 = vrcp.pop %v1647
    %v1650 = vmul.f32 1.0, %v1649
    %v1651 = vrcp.pop %v1648
    %v1652 = vmul.f32 1.0, %v1651
    %v1653 = vxor.u32 %v1634, 2147483648
    %v1654 = vxor.u32 %v1638, 2147483648
    %v1655 = vmul.f32 %v1653, 1.442695
    %v1656 = vpow.pop %v1655
    %v1657 = vmul.f32 %v1654, 1.442695
    %v1658 = vpow.pop %v1657
    %v1659 = vadd.f32 %v1656, 1.0
    %v1660 = vadd.f32 %v1658, 1.0
    %v1661 = vrcp.pop %v1659
    %v1662 = vmul.f32 1.0, %v1661
    %v1663 = vrcp.pop %v1660
    %v1664 = vmul.f32 1.0, %v1663
    %v1665 = vtanh.pop %v1635
    %v1666 = vtanh.pop %v1639
    %v1667 = vxor.u32 %v1636, 2147483648
    %v1668 = vxor.u32 %v1640, 2147483648
    %v1669 = vmul.f32 %v1667, 1.442695
    %v1670 = vpow.pop %v1669
    %v1671 = vmul.f32 %v1668, 1.442695
    %v1672 = vpow.pop %v1671
    %v1673 = vadd.f32 %v1670, 1.0
    %v1674 = vadd.f32 %v1672, 1.0
    %v1675 = vrcp.pop %v1673
    %v1676 = vmul.f32 1.0, %v1675
    %v1677 = vrcp.pop %v1674
    %v1678 = vmul.f32 1.0, %v1677
    %v1681 = vrot.slane %v1459, 7
    %v1682 = vrot.slane %v1460, 7
    %v1685 = vmul.f32 %v1662, %v1681
    %v1686 = vmul.f32 %v1664, %v1682
    %v1687 = vmul.f32 %v1650, %v1665
    %v1688 = vmul.f32 %v1652, %v1666
    %v1689 = vadd.f32 %v1685, %v1687
    %v1690 = vadd.f32 %v1686, %v1688
    %v1691 = vtanh.pop %v1689
    %v1692 = vtanh.pop %v1690
    %v1693 = vmul.f32 %v1676, %v1691
    %v1694 = vmul.f32 %v1678, %v1692
    %v1697 = vrot.slane %v1693, 5
    %v1698 = vrot.slane %v1694, 4
    %v1699 = vsel %vm553, %v1698, %v1697
    %1701 = vmatprep.subr.mxu0 %v273
    %1702 = vmatpush1.msra.mxu0 %v272
    %1703 = vmatprep.subr.mxu0 %v277
    %1704 = vmatpush1.msra.mxu0 %v276
    %1705 = vmatprep.subr.mxu0 %v281
    %1706 = vmatpush1.msra.mxu0 %v280
    %1707 = vmatprep.subr.mxu0 %v285
    %1708 = vmatpush1.msra.mxu0 %v284
    %1709 = vmatprep.subr.mxu0 %v289
    %1710 = vmatpush1.msra.mxu0 %v288
    %1711 = vmatprep.subr.mxu0 %v293
    %1712 = vmatpush1.msra.mxu0 %v292
    %1713 = vmatprep.subr.mxu0 %v297
    %1714 = vmatpush1.msra.mxu0 %v296
    %1715 = vmatprep.subr.mxu0 %v301
    %1716 = vmatpush1.msra.mxu0 %v300
    %1717 = vmatprep.subr.mxu0 %v305
    %1718 = vmatpush1.msra.mxu0 %v304
    %1719 = vmatprep.subr.mxu0 %v309
    %1720 = vmatpush1.msra.mxu0 %v308
    %1721 = vmatprep.subr.mxu0 %v313
    %1722 = vmatpush1.msra.mxu0 %v312
    %1723 = vmatprep.subr.mxu0 %v317
    %1724 = vmatpush1.msra.mxu0 %v316
    %1725 = vmatprep.subr.mxu0 %v321
    %1726 = vmatpush1.msra.mxu0 %v320
    %1727 = vmatprep.subr.mxu0 %v325
    %1728 = vmatpush1.msra.mxu0 %v324
    %1729 = vmatprep.subr.mxu0 %v329
    %1730 = vmatpush1.msra.mxu0 %v328
    %1731 = vmatprep.subr.mxu0 %v333
    %1732 = vmatpush1.msra.mxu0 %v332
    %1733 = vmatprep.subr.mxu0 0.0
    %1734 = vmatpush1.msra.mxu0 0.0
    %1735 = vmatprep.subr.mxu0 0.0
    %1736 = vmatpush1.msra.mxu0 0.0
    %1737 = vmatprep.subr.mxu0 0.0
    %1738 = vmatpush1.msra.mxu0 0.0
    %1739 = vmatprep.subr.mxu0 0.0
    %1740 = vmatpush1.msra.mxu0 0.0
    %1741 = vmatprep.subr.mxu0 0.0
    %1742 = vmatpush1.msra.mxu0 0.0
    %1743 = vmatprep.subr.mxu0 0.0
    %1744 = vmatpush1.msra.mxu0 0.0
    %1745 = vmatprep.subr.mxu0 0.0
    %1746 = vmatpush1.msra.mxu0 0.0
    %1747 = vmatprep.subr.mxu0 0.0
    %1748 = vmatpush1.msra.mxu0 0.0
    %1749 = vmatprep.subr.mxu0 0.0
    %1750 = vmatpush1.msra.mxu0 0.0
    %1751 = vmatprep.subr.mxu0 0.0
    %1752 = vmatpush1.msra.mxu0 0.0
    %1753 = vmatprep.subr.mxu0 0.0
    %1754 = vmatpush1.msra.mxu0 0.0
    %1755 = vmatprep.subr.mxu0 0.0
    %1756 = vmatpush1.msra.mxu0 0.0
    %1757 = vmatprep.subr.mxu0 0.0
    %1758 = vmatpush1.msra.mxu0 0.0
    %1759 = vmatprep.subr.mxu0 0.0
    %1760 = vmatpush1.msra.mxu0 0.0
    %1761 = vmatprep.subr.mxu0 0.0
    %1762 = vmatpush1.msra.mxu0 0.0
    %1763 = vmatprep.subr.mxu0 0.0
    %1764 = vmatpush1.msra.mxu0 0.0
    %1765 = vmatprep.mubr.f32.mxu0 0.0
    %1766 = vmatmul.mubr.f32.gmra.mrb[0].mxu0 %v1699
    %v1767 = vpop.f32.mrb[0].mxu0
    %v1768 = vadd.f32 0.0, %v1767
    %v1769 = vpop.f32.mrb[0].mxu0
    %v1770 = vadd.f32 0.0, %v1769
    %1771 = vdwg.mxu0
    %1772 = vmatprep.subr.mxu0 %v275
    %1773 = vmatpush1.msra.mxu0 %v274
    %1774 = vmatprep.subr.mxu0 %v279
    %1775 = vmatpush1.msra.mxu0 %v278
    %1776 = vmatprep.subr.mxu0 %v283
    %1777 = vmatpush1.msra.mxu0 %v282
    %1778 = vmatprep.subr.mxu0 %v287
    %1779 = vmatpush1.msra.mxu0 %v286
    %1780 = vmatprep.subr.mxu0 %v291
    %1781 = vmatpush1.msra.mxu0 %v290
    %1782 = vmatprep.subr.mxu0 %v295
    %1783 = vmatpush1.msra.mxu0 %v294
    %1784 = vmatprep.subr.mxu0 %v299
    %1785 = vmatpush1.msra.mxu0 %v298
    %1786 = vmatprep.subr.mxu0 %v303
    %1787 = vmatpush1.msra.mxu0 %v302
    %1788 = vmatprep.subr.mxu0 %v307
    %1789 = vmatpush1.msra.mxu0 %v306
    %1790 = vmatprep.subr.mxu0 %v311
    %1791 = vmatpush1.msra.mxu0 %v310
    %1792 = vmatprep.subr.mxu0 %v315
    %1793 = vmatpush1.msra.mxu0 %v314
    %1794 = vmatprep.subr.mxu0 %v319
    %1795 = vmatpush1.msra.mxu0 %v318
    %1796 = vmatprep.subr.mxu0 %v323
    %1797 = vmatpush1.msra.mxu0 %v322
    %1798 = vmatprep.subr.mxu0 %v327
    %1799 = vmatpush1.msra.mxu0 %v326
    %1800 = vmatprep.subr.mxu0 %v331
    %1801 = vmatpush1.msra.mxu0 %v330
    %1802 = vmatprep.subr.mxu0 %v335
    %1803 = vmatpush1.msra.mxu0 %v334
    %1804 = vmatprep.subr.mxu0 0.0
    %1805 = vmatpush1.msra.mxu0 0.0
    %1806 = vmatprep.subr.mxu0 0.0
    %1807 = vmatpush1.msra.mxu0 0.0
    %1808 = vmatprep.subr.mxu0 0.0
    %1809 = vmatpush1.msra.mxu0 0.0
    %1810 = vmatprep.subr.mxu0 0.0
    %1811 = vmatpush1.msra.mxu0 0.0
    %1812 = vmatprep.subr.mxu0 0.0
    %1813 = vmatpush1.msra.mxu0 0.0
    %1814 = vmatprep.subr.mxu0 0.0
    %1815 = vmatpush1.msra.mxu0 0.0
    %1816 = vmatprep.subr.mxu0 0.0
    %1817 = vmatpush1.msra.mxu0 0.0
    %1818 = vmatprep.subr.mxu0 0.0
    %1819 = vmatpush1.msra.mxu0 0.0
    %1820 = vmatprep.subr.mxu0 0.0
    %1821 = vmatpush1.msra.mxu0 0.0
    %1822 = vmatprep.subr.mxu0 0.0
    %1823 = vmatpush1.msra.mxu0 0.0
    %1824 = vmatprep.subr.mxu0 0.0
    %1825 = vmatpush1.msra.mxu0 0.0
    %1826 = vmatprep.subr.mxu0 0.0
    %1827 = vmatpush1.msra.mxu0 0.0
    %1828 = vmatprep.subr.mxu0 0.0
    %1829 = vmatpush1.msra.mxu0 0.0
    %1830 = vmatprep.subr.mxu0 0.0
    %1831 = vmatpush1.msra.mxu0 0.0
    %1832 = vmatprep.subr.mxu0 0.0
    %1833 = vmatpush1.msra.mxu0 0.0
    %1834 = vmatprep.subr.mxu0 0.0
    %1835 = vmatpush1.msra.mxu0 0.0
    %1836 = vmatprep.mubr.f32.mxu0 0.0
    %1837 = vmatmul.mubr.f32.gmra.mrb[0].mxu0 %v1699
    %v1838 = vpop.f32.mrb[0].mxu0
    %v1839 = vadd.f32 0.0, %v1838
    %v1840 = vpop.f32.mrb[0].mxu0
    %v1841 = vadd.f32 0.0, %v1840
    %1842 = vdwg.mxu0
    %v1847 = vrot.slane %v1768, 2
    %v1848 = vrot.slane %v1770, 2
    %v1849 = vrot.slane %v1839, 2
    %v1850 = vrot.slane %v1841, 2
    %v1851 = vrot.slane %v1768, 3
    %v1852 = vrot.slane %v1770, 3
    %v1853 = vrot.slane %v1839, 3
    %v1854 = vrot.slane %v1841, 3
    %v1863 = vadd.f32 %v185, %v1847
    %v1864 = vadd.f32 %v187, %v1848
    %v1865 = vadd.f32 %v262, %v1849
    %v1866 = vadd.f32 %v264, %v1850
    %v1867 = vadd.f32 %v191, %v1851
    %v1868 = vadd.f32 %v193, %v1852
    %v1869 = vadd.f32 %v268, %v1853
    %v1870 = vadd.f32 %v270, %v1854
    %v1871 = vxor.u32 %v1863, 2147483648
    %v1872 = vxor.u32 %v1867, 2147483648
    %v1873 = vmul.f32 %v1871, 1.442695
    %v1874 = vpow.pop %v1873
    %v1875 = vmul.f32 %v1872, 1.442695
    %v1876 = vpow.pop %v1875
    %v1877 = vadd.f32 %v1874, 1.0
    %v1878 = vadd.f32 %v1876, 1.0
    %v1879 = vrcp.pop %v1877
    %v1880 = vmul.f32 1.0, %v1879
    %v1881 = vrcp.pop %v1878
    %v1882 = vmul.f32 1.0, %v1881
    %v1883 = vxor.u32 %v1864, 2147483648
    %v1884 = vxor.u32 %v1868, 2147483648
    %v1885 = vmul.f32 %v1883, 1.442695
    %v1886 = vpow.pop %v1885
    %v1887 = vmul.f32 %v1884, 1.442695
    %v1888 = vpow.pop %v1887
    %v1889 = vadd.f32 %v1886, 1.0
    %v1890 = vadd.f32 %v1888, 1.0
    %v1891 = vrcp.pop %v1889
    %v1892 = vmul.f32 1.0, %v1891
    %v1893 = vrcp.pop %v1890
    %v1894 = vmul.f32 1.0, %v1893
    %v1895 = vtanh.pop %v1865
    %v1896 = vtanh.pop %v1869
    %v1897 = vxor.u32 %v1866, 2147483648
    %v1898 = vxor.u32 %v1870, 2147483648
    %v1899 = vmul.f32 %v1897, 1.442695
    %v1900 = vpow.pop %v1899
    %v1901 = vmul.f32 %v1898, 1.442695
    %v1902 = vpow.pop %v1901
    %v1903 = vadd.f32 %v1900, 1.0
    %v1904 = vadd.f32 %v1902, 1.0
    %v1905 = vrcp.pop %v1903
    %v1906 = vmul.f32 1.0, %v1905
    %v1907 = vrcp.pop %v1904
    %v1908 = vmul.f32 1.0, %v1907
    %v1911 = vrot.slane %v1689, 7
    %v1912 = vrot.slane %v1690, 7
    %v1915 = vmul.f32 %v1892, %v1911
    %v1916 = vmul.f32 %v1894, %v1912
    %v1917 = vmul.f32 %v1880, %v1895
    %v1918 = vmul.f32 %v1882, %v1896
    %v1919 = vadd.f32 %v1915, %v1917
    %v1920 = vadd.f32 %v1916, %v1918
    %v1921 = vtanh.pop %v1919
    %v1922 = vtanh.pop %v1920
    %v1923 = vmul.f32 %v1906, %v1921
    %v1924 = vmul.f32 %v1908, %v1922
    %v1927 = vrot.slane %v1923, 6
    %v1928 = vrot.slane %v1924, 5
    %v1929 = vsel %vm553, %v1928, %v1927
    %1931 = vmatprep.subr.mxu0 %v273
    %1932 = vmatpush1.msra.mxu0 %v272
    %1933 = vmatprep.subr.mxu0 %v277
    %1934 = vmatpush1.msra.mxu0 %v276
    %1935 = vmatprep.subr.mxu0 %v281
    %1936 = vmatpush1.msra.mxu0 %v280
    %1937 = vmatprep.subr.mxu0 %v285
    %1938 = vmatpush1.msra.mxu0 %v284
    %1939 = vmatprep.subr.mxu0 %v289
    %1940 = vmatpush1.msra.mxu0 %v288
    %1941 = vmatprep.subr.mxu0 %v293
    %1942 = vmatpush1.msra.mxu0 %v292
    %1943 = vmatprep.subr.mxu0 %v297
    %1944 = vmatpush1.msra.mxu0 %v296
    %1945 = vmatprep.subr.mxu0 %v301
    %1946 = vmatpush1.msra.mxu0 %v300
    %1947 = vmatprep.subr.mxu0 %v305
    %1948 = vmatpush1.msra.mxu0 %v304
    %1949 = vmatprep.subr.mxu0 %v309
    %1950 = vmatpush1.msra.mxu0 %v308
    %1951 = vmatprep.subr.mxu0 %v313
    %1952 = vmatpush1.msra.mxu0 %v312
    %1953 = vmatprep.subr.mxu0 %v317
    %1954 = vmatpush1.msra.mxu0 %v316
    %1955 = vmatprep.subr.mxu0 %v321
    %1956 = vmatpush1.msra.mxu0 %v320
    %1957 = vmatprep.subr.mxu0 %v325
    %1958 = vmatpush1.msra.mxu0 %v324
    %1959 = vmatprep.subr.mxu0 %v329
    %1960 = vmatpush1.msra.mxu0 %v328
    %1961 = vmatprep.subr.mxu0 %v333
    %1962 = vmatpush1.msra.mxu0 %v332
    %1963 = vmatprep.subr.mxu0 0.0
    %1964 = vmatpush1.msra.mxu0 0.0
    %1965 = vmatprep.subr.mxu0 0.0
    %1966 = vmatpush1.msra.mxu0 0.0
    %1967 = vmatprep.subr.mxu0 0.0
    %1968 = vmatpush1.msra.mxu0 0.0
    %1969 = vmatprep.subr.mxu0 0.0
    %1970 = vmatpush1.msra.mxu0 0.0
    %1971 = vmatprep.subr.mxu0 0.0
    %1972 = vmatpush1.msra.mxu0 0.0
    %1973 = vmatprep.subr.mxu0 0.0
    %1974 = vmatpush1.msra.mxu0 0.0
    %1975 = vmatprep.subr.mxu0 0.0
    %1976 = vmatpush1.msra.mxu0 0.0
    %1977 = vmatprep.subr.mxu0 0.0
    %1978 = vmatpush1.msra.mxu0 0.0
    %1979 = vmatprep.subr.mxu0 0.0
    %1980 = vmatpush1.msra.mxu0 0.0
    %1981 = vmatprep.subr.mxu0 0.0
    %1982 = vmatpush1.msra.mxu0 0.0
    %1983 = vmatprep.subr.mxu0 0.0
    %1984 = vmatpush1.msra.mxu0 0.0
    %1985 = vmatprep.subr.mxu0 0.0
    %1986 = vmatpush1.msra.mxu0 0.0
    %1987 = vmatprep.subr.mxu0 0.0
    %1988 = vmatpush1.msra.mxu0 0.0
    %1989 = vmatprep.subr.mxu0 0.0
    %1990 = vmatpush1.msra.mxu0 0.0
    %1991 = vmatprep.subr.mxu0 0.0
    %1992 = vmatpush1.msra.mxu0 0.0
    %1993 = vmatprep.subr.mxu0 0.0
    %1994 = vmatpush1.msra.mxu0 0.0
    %1995 = vmatprep.mubr.f32.mxu0 0.0
    %1996 = vmatmul.mubr.f32.gmra.mrb[0].mxu0 %v1929
    %v1997 = vpop.f32.mrb[0].mxu0
    %v1998 = vadd.f32 0.0, %v1997
    %v1999 = vpop.f32.mrb[0].mxu0
    %v2000 = vadd.f32 0.0, %v1999
    %2001 = vdwg.mxu0
    %2002 = vmatprep.subr.mxu0 %v275
    %2003 = vmatpush1.msra.mxu0 %v274
    %2004 = vmatprep.subr.mxu0 %v279
    %2005 = vmatpush1.msra.mxu0 %v278
    %2006 = vmatprep.subr.mxu0 %v283
    %2007 = vmatpush1.msra.mxu0 %v282
    %2008 = vmatprep.subr.mxu0 %v287
    %2009 = vmatpush1.msra.mxu0 %v286
    %2010 = vmatprep.subr.mxu0 %v291
    %2011 = vmatpush1.msra.mxu0 %v290
    %2012 = vmatprep.subr.mxu0 %v295
    %2013 = vmatpush1.msra.mxu0 %v294
    %2014 = vmatprep.subr.mxu0 %v299
    %2015 = vmatpush1.msra.mxu0 %v298
    %2016 = vmatprep.subr.mxu0 %v303
    %2017 = vmatpush1.msra.mxu0 %v302
    %2018 = vmatprep.subr.mxu0 %v307
    %2019 = vmatpush1.msra.mxu0 %v306
    %2020 = vmatprep.subr.mxu0 %v311
    %2021 = vmatpush1.msra.mxu0 %v310
    %2022 = vmatprep.subr.mxu0 %v315
    %2023 = vmatpush1.msra.mxu0 %v314
    %2024 = vmatprep.subr.mxu0 %v319
    %2025 = vmatpush1.msra.mxu0 %v318
    %2026 = vmatprep.subr.mxu0 %v323
    %2027 = vmatpush1.msra.mxu0 %v322
    %2028 = vmatprep.subr.mxu0 %v327
    %2029 = vmatpush1.msra.mxu0 %v326
    %2030 = vmatprep.subr.mxu0 %v331
    %2031 = vmatpush1.msra.mxu0 %v330
    %2032 = vmatprep.subr.mxu0 %v335
    %2033 = vmatpush1.msra.mxu0 %v334
    %2034 = vmatprep.subr.mxu0 0.0
    %2035 = vmatpush1.msra.mxu0 0.0
    %2036 = vmatprep.subr.mxu0 0.0
    %2037 = vmatpush1.msra.mxu0 0.0
    %2038 = vmatprep.subr.mxu0 0.0
    %2039 = vmatpush1.msra.mxu0 0.0
    %2040 = vmatprep.subr.mxu0 0.0
    %2041 = vmatpush1.msra.mxu0 0.0
    %2042 = vmatprep.subr.mxu0 0.0
    %2043 = vmatpush1.msra.mxu0 0.0
    %2044 = vmatprep.subr.mxu0 0.0
    %2045 = vmatpush1.msra.mxu0 0.0
    %2046 = vmatprep.subr.mxu0 0.0
    %2047 = vmatpush1.msra.mxu0 0.0
    %2048 = vmatprep.subr.mxu0 0.0
    %2049 = vmatpush1.msra.mxu0 0.0
    %2050 = vmatprep.subr.mxu0 0.0
    %2051 = vmatpush1.msra.mxu0 0.0
    %2052 = vmatprep.subr.mxu0 0.0
    %2053 = vmatpush1.msra.mxu0 0.0
    %2054 = vmatprep.subr.mxu0 0.0
    %2055 = vmatpush1.msra.mxu0 0.0
    %2056 = vmatprep.subr.mxu0 0.0
    %2057 = vmatpush1.msra.mxu0 0.0
    %2058 = vmatprep.subr.mxu0 0.0
    %2059 = vmatpush1.msra.mxu0 0.0
    %2060 = vmatprep.subr.mxu0 0.0
    %2061 = vmatpush1.msra.mxu0 0.0
    %2062 = vmatprep.subr.mxu0 0.0
    %2063 = vmatpush1.msra.mxu0 0.0
    %2064 = vmatprep.subr.mxu0 0.0
    %2065 = vmatpush1.msra.mxu0 0.0
    %2066 = vmatprep.mubr.f32.mxu0 0.0
    %2067 = vmatmul.mubr.f32.gmra.mrb[0].mxu0 %v1929
    %v2068 = vpop.f32.mrb[0].mxu0
    %v2069 = vadd.f32 0.0, %v2068
    %v2070 = vpop.f32.mrb[0].mxu0
    %v2071 = vadd.f32 0.0, %v2070
    %2072 = vdwg.mxu0
    %v2077 = vrot.slane %v1998, 1
    %v2078 = vrot.slane %v2000, 1
    %v2079 = vrot.slane %v2069, 1
    %v2080 = vrot.slane %v2071, 1
    %v2081 = vrot.slane %v1998, 2
    %v2082 = vrot.slane %v2000, 2
    %v2083 = vrot.slane %v2069, 2
    %v2084 = vrot.slane %v2071, 2
    %v2093 = vadd.f32 %v185, %v2077
    %v2094 = vadd.f32 %v187, %v2078
    %v2095 = vadd.f32 %v262, %v2079
    %v2096 = vadd.f32 %v264, %v2080
    %v2097 = vadd.f32 %v191, %v2081
    %v2098 = vadd.f32 %v193, %v2082
    %v2099 = vadd.f32 %v268, %v2083
    %v2100 = vadd.f32 %v270, %v2084
    %v2101 = vxor.u32 %v2093, 2147483648
    %v2102 = vxor.u32 %v2097, 2147483648
    %v2103 = vmul.f32 %v2101, 1.442695
    %v2104 = vpow.pop %v2103
    %v2105 = vmul.f32 %v2102, 1.442695
    %v2106 = vpow.pop %v2105
    %v2107 = vadd.f32 %v2104, 1.0
    %v2108 = vadd.f32 %v2106, 1.0
    %v2109 = vrcp.pop %v2107
    %v2110 = vmul.f32 1.0, %v2109
    %v2111 = vrcp.pop %v2108
    %v2112 = vmul.f32 1.0, %v2111
    %v2113 = vxor.u32 %v2094, 2147483648
    %v2114 = vxor.u32 %v2098, 2147483648
    %v2115 = vmul.f32 %v2113, 1.442695
    %v2116 = vpow.pop %v2115
    %v2117 = vmul.f32 %v2114, 1.442695
    %v2118 = vpow.pop %v2117
    %v2119 = vadd.f32 %v2116, 1.0
    %v2120 = vadd.f32 %v2118, 1.0
    %v2121 = vrcp.pop %v2119
    %v2122 = vmul.f32 1.0, %v2121
    %v2123 = vrcp.pop %v2120
    %v2124 = vmul.f32 1.0, %v2123
    %v2125 = vtanh.pop %v2095
    %v2126 = vtanh.pop %v2099
    %v2127 = vxor.u32 %v2096, 2147483648
    %v2128 = vxor.u32 %v2100, 2147483648
    %v2129 = vmul.f32 %v2127, 1.442695
    %v2130 = vpow.pop %v2129
    %v2131 = vmul.f32 %v2128, 1.442695
    %v2132 = vpow.pop %v2131
    %v2133 = vadd.f32 %v2130, 1.0
    %v2134 = vadd.f32 %v2132, 1.0
    %v2135 = vrcp.pop %v2133
    %v2136 = vmul.f32 1.0, %v2135
    %v2137 = vrcp.pop %v2134
    %v2138 = vmul.f32 1.0, %v2137
    %v2141 = vrot.slane %v1919, 7
    %v2142 = vrot.slane %v1920, 7
    %v2145 = vmul.f32 %v2122, %v2141
    %v2146 = vmul.f32 %v2124, %v2142
    %v2147 = vmul.f32 %v2110, %v2125
    %v2148 = vmul.f32 %v2112, %v2126
    %v2149 = vadd.f32 %v2145, %v2147
    %v2150 = vadd.f32 %v2146, %v2148
    %v2151 = vtanh.pop %v2149
    %v2152 = vtanh.pop %v2150
    %v2153 = vmul.f32 %v2136, %v2151
    %v2154 = vmul.f32 %v2138, %v2152
    %v2155 = vld [vmem:[#allocation8] sm:$0xff]
    %v2156 = vld [vmem:[#allocation8 + $0x8] sm:$0xff]
    %v2157 = vld [vmem:[#allocation8 + $0x10] sm:$0xff]
    %v2158 = vld [vmem:[#allocation8 + $0x18] sm:$0xff]
    %v2159 = vld [vmem:[#allocation8 + $0x20] sm:$0xff]
    %v2160 = vld [vmem:[#allocation8 + $0x28] sm:$0xff]
    %v2161 = vld [vmem:[#allocation8 + $0x30] sm:$0xff]
    %v2162 = vld [vmem:[#allocation8 + $0x38] sm:$0xff]
    %v2163 = vld [vmem:[#allocation8 + $0x40] sm:$0xff]
    %v2164 = vld [vmem:[#allocation8 + $0x48] sm:$0xff]
    %v2165 = vld [vmem:[#allocation8 + $0x50] sm:$0xff]
    %v2166 = vld [vmem:[#allocation8 + $0x58] sm:$0xff]
    %v2167 = vld [vmem:[#allocation8 + $0x60] sm:$0xff]
    %v2168 = vld [vmem:[#allocation8 + $0x68] sm:$0xff]
    %v2169 = vld [vmem:[#allocation8 + $0x70] sm:$0xff]
    %v2170 = vld [vmem:[#allocation8 + $0x78] sm:$0xff]
    %v2171 = vld [vmem:[%s5] sm:$0x1]
    %v2173 = vlaneseq
    %v2174 = vshrl.u32 %v2173, 7
    %v2175 = vsub.s32 0, %v2174
    %v2176 = vrot.slane %v2171, %v2175
    %v2180 = vrot.slane %v2153, 7
    %v2181 = vrot.slane %v2154, 6
    %v2182 = vsel %vm553, %v2181, %v2180
    %2184 = vmatprep.subr.mxu0 0.0
    %2185 = vmatpush1.msra.mxu0 %v2155
    %2186 = vmatprep.subr.mxu0 0.0
    %2187 = vmatpush1.msra.mxu0 %v2156
    %2188 = vmatprep.subr.mxu0 0.0
    %2189 = vmatpush1.msra.mxu0 %v2157
    %2190 = vmatprep.subr.mxu0 0.0
    %2191 = vmatpush1.msra.mxu0 %v2158
    %2192 = vmatprep.subr.mxu0 0.0
    %2193 = vmatpush1.msra.mxu0 %v2159
    %2194 = vmatprep.subr.mxu0 0.0
    %2195 = vmatpush1.msra.mxu0 %v2160
    %2196 = vmatprep.subr.mxu0 0.0
    %2197 = vmatpush1.msra.mxu0 %v2161
    %2198 = vmatprep.subr.mxu0 0.0
    %2199 = vmatpush1.msra.mxu0 %v2162
    %2200 = vmatprep.subr.mxu0 0.0
    %2201 = vmatpush1.msra.mxu0 %v2163
    %2202 = vmatprep.subr.mxu0 0.0
    %2203 = vmatpush1.msra.mxu0 %v2164
    %2204 = vmatprep.subr.mxu0 0.0
    %2205 = vmatpush1.msra.mxu0 %v2165
    %2206 = vmatprep.subr.mxu0 0.0
    %2207 = vmatpush1.msra.mxu0 %v2166
    %2208 = vmatprep.subr.mxu0 0.0
    %2209 = vmatpush1.msra.mxu0 %v2167
    %2210 = vmatprep.subr.mxu0 0.0
    %2211 = vmatpush1.msra.mxu0 %v2168
    %2212 = vmatprep.subr.mxu0 0.0
    %2213 = vmatpush1.msra.mxu0 %v2169
    %2214 = vmatprep.subr.mxu0 0.0
    %2215 = vmatpush1.msra.mxu0 %v2170
    %2216 = vmatprep.subr.mxu0 0.0
    %2217 = vmatpush1.msra.mxu0 0.0
    %2218 = vmatprep.subr.mxu0 0.0
    %2219 = vmatpush1.msra.mxu0 0.0
    %2220 = vmatprep.subr.mxu0 0.0
    %2221 = vmatpush1.msra.mxu0 0.0
    %2222 = vmatprep.subr.mxu0 0.0
    %2223 = vmatpush1.msra.mxu0 0.0
    %2224 = vmatprep.subr.mxu0 0.0
    %2225 = vmatpush1.msra.mxu0 0.0
    %2226 = vmatprep.subr.mxu0 0.0
    %2227 = vmatpush1.msra.mxu0 0.0
    %2228 = vmatprep.subr.mxu0 0.0
    %2229 = vmatpush1.msra.mxu0 0.0
    %2230 = vmatprep.subr.mxu0 0.0
    %2231 = vmatpush1.msra.mxu0 0.0
    %2232 = vmatprep.subr.mxu0 0.0
    %2233 = vmatpush1.msra.mxu0 0.0
    %2234 = vmatprep.subr.mxu0 0.0
    %2235 = vmatpush1.msra.mxu0 0.0
    %2236 = vmatprep.subr.mxu0 0.0
    %2237 = vmatpush1.msra.mxu0 0.0
    %2238 = vmatprep.subr.mxu0 0.0
    %2239 = vmatpush1.msra.mxu0 0.0
    %2240 = vmatprep.subr.mxu0 0.0
    %2241 = vmatpush1.msra.mxu0 0.0
    %2242 = vmatprep.subr.mxu0 0.0
    %2243 = vmatpush1.msra.mxu0 0.0
    %2244 = vmatprep.subr.mxu0 0.0
    %2245 = vmatpush1.msra.mxu0 0.0
    %2246 = vmatprep.subr.mxu0 0.0
    %2247 = vmatpush1.msra.mxu0 0.0
    %2248 = vmatprep.mubr.f32.mxu0 0.0
    %2249 = vmatmul.mubr.f32.gmra.mrb[0].mxu0 %v2182
    %v2250 = vpop.f32.mrb[0].mxu0
    %v2251 = vadd.f32 %v2176, %v2250
    %v2252 = vpop.f32.mrb[0].mxu0
    %2253 = vdwg.mxu0
    %vm2254 = vcmask 1041408
    %v2255 = vsel %vm2254, %v2251, -inf
    %2256 = vmax.xlane.f32.xlu0 %v2255
    %v2257 = vpop.xlane.xlu0 %2256
    %v2258 = vsub.f32 %v2251, %v2257
    %v2259 = vmul.f32 %v2258, 1.442695
    %v2260 = vpow.pop %v2259
    %v2261 = vsel %vm2254, %v2260, 0.0
    %2262 = vadd.xlane.f32.xlu0 %v2261
    %v2263 = vpop.xlane.xlu0 %2262
    %v2264 = vrcp.pop %v2263
    %v2265 = vmul.f32 %v2260, %v2264
    %2266 = vst [vmem:[#allocation10] sm:$0x3] %v2265
    // Predicated region
    $region42: #{tpu_custom_call.1} parent=1 // pred_check
      _
    $region43: #{tpu_custom_call.1} parent=1 // pred_check_branch
      %2268 = sbr.rel (0) target = $region45
    $region44: #{tpu_custom_call.1} parent=1 // pred_region
      %s2270 = ssub.s32 32, 32
      %2271 = vsyncadd [#allocation4], %s2270
      %s2273 = sshll.u32 [#allocation10], 4
      %s2274 = int_to_ptr.vmem [resolvable:$true] %s2273
      %2276 = dma.vmem_to_hbm [thread:$0]  %s2274, 32, %s6, [#allocation4]
    $region45: #{tpu_custom_call.1} parent=1 // pred_fallthru
      _
    // Predicated region
    $region46: #{tpu_custom_call.1} parent=1 // pred_check
      _
    $region47: #{tpu_custom_call.1} parent=1 // pred_check_branch
      %2278 = sbr.rel (0) target = $region49
    $region48: #{tpu_custom_call.1} parent=1 // pred_region
      %2279 = dma.done [#allocation4], 32
    $region49: #{tpu_custom_call.1} parent=1 // pred_fallthru
      _
    %2280 = vsyncpa [#allocation3], 1
    %2281 = vsyncpa [#allocation6], 1
    %2282 = vsyncpa [#allocation9], 1
    %2283 = vsyncpa [#allocation4], 1

</llo_original>
